<compile_context>
chip_gen: v7x
topology: tpu7x:2x2x1
jax: 0.10.0
libtpu: 0.0.40
codegen_flags: <defaults>
</compile_context>

<pallas_src>
import math

import jax
import jax.numpy as jnp
from jax import lax
from jax.experimental import pallas as pl
from jax.experimental.pallas import tpu as pltpu


def _tpu_generation():
    """Best-effort TPU generation sniff (0 = unknown -> conservative paths)."""
    try:
        kind = jax.devices()[0].device_kind.lower()
    except Exception:
        return 0
    if "v7" in kind or "tpu7" in kind:
        return 7
    for g in (6, 5, 4, 3, 2):
        if f"v{g}" in kind:
            return g
    return 0


def _make_kernel(num_heads, head_dim, hidden, sq_tile, ln_eps, emit_probs,
                 use_bf16_exp):
    H, NH, dh = hidden, num_heads, head_dim

    def kernel(x_ref, g_ref, b_ref, wqkv_ref, bqkv_ref, wo3_ref, bo_ref,
               *out_and_scratch):
        if emit_probs:
            out_ref, probs_ref = out_and_scratch[0], out_and_scratch[1]
            q_sc, kT_sc, v_sc = out_and_scratch[2:]
        else:
            out_ref = out_and_scratch[0]
            probs_ref = None
            q_sc, kT_sc, v_sc = out_and_scratch[1:]

        qi = pl.program_id(1)

        # ---- once per batch element: LayerNorm + fused QKV projection ----
        @pl.when(qi == 0)
        def _():
            x = x_ref[0]                                         # (S, H) f32
            mean = jnp.mean(x, axis=-1, keepdims=True)
            var = jnp.mean(jnp.square(x - mean), axis=-1, keepdims=True)
            xn = (x - mean) * lax.rsqrt(var + ln_eps)
            xn = xn * g_ref[...] + b_ref[...]
            # wq/bq were pre-scaled by 1/sqrt(dh) on the host.
            qkv = jnp.dot(xn.astype(jnp.bfloat16), wqkv_ref[...],
                          preferred_element_type=jnp.float32) + bqkv_ref[...]
            # Stash per-head Q, K^T (pre-transposed, lane-dense), V as bf16.
            # TODO(synk): fuse these per-head slice copies into one
            # lane-layout-aware relayout (pltpu.einshape) once validated.
            for h in range(NH):
                q_sc[h] = qkv[:, h * dh:(h + 1) * dh].astype(jnp.bfloat16)
                kT_sc[h] = (qkv[:, H + h * dh:H + (h + 1) * dh].T
                            .astype(jnp.bfloat16))               # (dh, S)
                v_sc[h] = (qkv[:, 2 * H + h * dh:2 * H + (h + 1) * dh]
                           .astype(jnp.bfloat16))

        start = pl.multiple_of(qi * sq_tile, sq_tile)
        q3 = q_sc[:, pl.ds(start, sq_tile), :]                   # (NH, sq, dh)
        kT3 = kT_sc[...]                                         # (NH, dh, S)
        v3 = v_sc[...]                                           # (NH, S,  dh)

        # scores[h, q, k] = sum_d q3[h,q,d] * kT3[h,d,k]  (standard-form matmul)
        scores = lax.dot_general(q3, kT3, (((2,), (1,)), ((0,), (0,))),
                                 preferred_element_type=jnp.float32)  # (NH,sq,S)
        m = jnp.max(scores, axis=-1, keepdims=True)

        if emit_probs:
            e = jnp.exp(scores - m)
            denom = jnp.sum(e, axis=-1, keepdims=True)
            p = e * pl.reciprocal(denom, approx=True)            # f32 probs
            probs_ref[0] = p
            p_mm = p.astype(jnp.bfloat16)
        elif use_bf16_exp:
            # bf16 EUP exp (v6e/v7x): ~2x exp throughput, halves spill bytes.
            e = jnp.exp((scores - m).astype(jnp.bfloat16))
            denom = jnp.sum(e.astype(jnp.float32), axis=-1, keepdims=True)
            p_mm = e * pl.reciprocal(denom, approx=True).astype(jnp.bfloat16)
        else:
            e = jnp.exp(scores - m)
            denom = jnp.sum(e, axis=-1, keepdims=True)
            p_mm = (e * pl.reciprocal(denom, approx=True)).astype(jnp.bfloat16)

        # ctx[h, q, d] = sum_k p[h,q,k] * v3[h,k,d]
        ctx = lax.dot_general(p_mm, v3, (((2,), (1,)), ((0,), (0,))),
                              preferred_element_type=jnp.float32)  # (NH, sq, dh)

        # Head-batched output projection + reduction over heads: no ctx scatter,
        # no (sq, H) scratch reload.
        y_h = lax.dot_general(ctx.astype(jnp.bfloat16), wo3_ref[...],
                              (((2,), (1,)), ((0,), (0,))),
                              preferred_element_type=jnp.float32)  # (NH, sq, H)
        y = jnp.sum(y_h, axis=0) + bo_ref[...]                     # (sq, H)

        # residual uses the *un-normalized* input (pre-LayerNorm architecture)
        x_tile = x_ref[0, pl.ds(start, sq_tile), :]
        out_ref[0] = (y + x_tile).astype(out_ref.dtype)

    return kernel


def roberta_prelayernorm_attention(hidden_states, params, *, num_heads,
                                   ln_eps=1e-12, output_attentions=False,
                                   sq_tile=None):
    """hidden_states: (B, S, H) f32. Returns attention_output
    (and attention_probs when output_attentions=True)."""
    B, S, H = hidden_states.shape
    dh = H // num_heads
    gen = _tpu_generation()

    if sq_tile is None:
        if (not output_attentions) and gen >= 6 and S % 256 == 0:
            sq_tile = 256
        elif S % 128 == 0:
            sq_tile = 128
        else:
            sq_tile = S
    assert S % sq_tile == 0, "sq_tile must divide the sequence length"
    nq = S // sq_tile

    use_bf16_exp = (gen >= 6) and (not output_attentions)

    # Fold 1/sqrt(dh) into the query weight/bias on the host (free VPU win).
    inv_sqrt_d = 1.0 / math.sqrt(dh)
    wqkv = jnp.concatenate([params["wq"] * inv_sqrt_d, params["wk"],
                            params["wv"]], axis=1).astype(jnp.bfloat16)  # (H, 3H)
    bqkv = jnp.concatenate([params["bq"] * inv_sqrt_d, params["bk"],
                            params["bv"]], axis=1)                        # (1, 3H)
    wo3 = params["wo"].reshape(num_heads, dh, H).astype(jnp.bfloat16)     # (NH,dh,H)

    kernel = _make_kernel(num_heads, dh, H, sq_tile, ln_eps,
                          output_attentions, use_bf16_exp)

    # TODO(synk): on v7x, single-buffer the constant-index weight specs
    # (pipeline_mode=pl.Buffered(1)) and hoist LN+QKV out of the kernel when
    # B < 2 so both TensorCores stay busy.
    x_spec = pl.BlockSpec((1, S, H), lambda b, q: (b, 0, 0))     # resident per batch
    vecH_spec = pl.BlockSpec((1, H), lambda b, q: (0, 0))
    wqkv_spec = pl.BlockSpec((H, 3 * H), lambda b, q: (0, 0))
    bqkv_spec = pl.BlockSpec((1, 3 * H), lambda b, q: (0, 0))
    wo3_spec = pl.BlockSpec((num_heads, dh, H), lambda b, q: (0, 0, 0))

    out_struct = jax.ShapeDtypeStruct((B, S, H), jnp.float32)
    out_spec = pl.BlockSpec((1, sq_tile, H), lambda b, q: (b, q, 0))
    if output_attentions:
        out_shape = (out_struct,
                     jax.ShapeDtypeStruct((B, num_heads, S, S), jnp.float32))
        out_specs = [out_spec,
                     pl.BlockSpec((1, num_heads, sq_tile, S),
                                  lambda b, q: (b, 0, q, 0))]
    else:
        out_shape = out_struct
        out_specs = out_spec

    scratch_shapes = [pltpu.VMEM((num_heads, S, dh), jnp.bfloat16),   # Q
                      pltpu.VMEM((num_heads, dh, S), jnp.bfloat16),   # K^T
                      pltpu.VMEM((num_heads, S, dh), jnp.bfloat16)]   # V

    # ---- generation-aware VMEM budget (lane padding + margin) ----
    def _pad(n, m=128):
        return ((n + m - 1) // m) * m
    f32b, b16b = 4, 2
    io_bytes = 2 * (S * _pad(H) * f32b + sq_tile * _pad(H) * f32b)
    if output_attentions:
        io_bytes += 2 * num_heads * sq_tile * _pad(S) * f32b
    w_bytes = 2 * (H * _pad(3 * H) * b16b + num_heads * dh * _pad(H) * b16b
                   + 8 * _pad(3 * H) * f32b + 3 * 8 * _pad(H) * f32b)
    scr_bytes = (2 * num_heads * S * _pad(dh) * b16b
                 + num_heads * dh * _pad(S) * b16b)
    need = int(1.25 * (io_bytes + w_bytes + scr_bytes)) + (2 << 20)
    cap = (56 << 20) if gen >= 7 else (100 << 20)   # headroom on v7x; 128 MiB phys on v5e/v6e
    vmem_limit = min(cap, max(16 << 20, need))

    # ---- cost estimate ----
    flops = int(B * (2 * S * H * 3 * H              # fused QKV projection
                     + 4 * num_heads * S * S * dh   # QK^T + PV
                     + 2 * S * H * H))              # output projection
    transcendentals = int(B * num_heads * S * S + B * S)
    bytes_accessed = int(B * S * H * 4 * 2
                         + (B * num_heads * S * S * 4 if output_attentions else 0)
                         + (3 * H * H + H * H) * 2 + 8 * H * 4)

    fn = pl.pallas_call(
        kernel,
        out_shape=out_shape,
        grid_spec=pltpu.PrefetchScalarGridSpec(
            num_scalar_prefetch=0,
            grid=(B, nq),
            in_specs=[x_spec,
                      vecH_spec, vecH_spec,        # LayerNorm gamma, beta
                      wqkv_spec, bqkv_spec,        # fused QKV weight / bias
                      wo3_spec, vecH_spec],        # output dense weight / bias
            out_specs=out_specs,
            scratch_shapes=scratch_shapes),
        compiler_params=pltpu.CompilerParams(
            dimension_semantics=("parallel", "arbitrary"),
            vmem_limit_bytes=vmem_limit),
        cost_estimate=pl.CostEstimate(flops=flops,
                                      transcendentals=transcendentals,
                                      bytes_accessed=bytes_accessed),
    )

    return fn(hidden_states,
              params["ln_gamma"], params["ln_beta"],
              wqkv, bqkv, wo3, params["bo"])


def init_params(key, hidden_size):
    """Deterministic parameter init. Linear weights stored pre-transposed as (in, out)."""
    ks = jax.random.split(key, 8)
    scale = 0.02
    H = hidden_size
    return {
        "ln_gamma": jnp.ones((1, H), jnp.float32),
        "ln_beta": jnp.zeros((1, H), jnp.float32),
        "wq": scale * jax.random.normal(ks[0], (H, H), jnp.float32),
        "bq": scale * jax.random.normal(ks[1], (1, H), jnp.float32),
        "wk": scale * jax.random.normal(ks[2], (H, H), jnp.float32),
        "bk": scale * jax.random.normal(ks[3], (1, H), jnp.float32),
        "wv": scale * jax.random.normal(ks[4], (H, H), jnp.float32),
        "bv": scale * jax.random.normal(ks[5], (1, H), jnp.float32),
        "wo": scale * jax.random.normal(ks[6], (H, H), jnp.float32),
        "bo": scale * jax.random.normal(ks[7], (1, H), jnp.float32),
    }


def reference_jax(hidden_states, params, *, num_heads, ln_eps=1e-12):
    """Pure-JAX f32 reference (mirrors the PyTorch module, eval mode)."""
    B, S, H = hidden_states.shape
    d = H // num_heads
    x = hidden_states
    mean = jnp.mean(x, axis=-1, keepdims=True)
    var = jnp.mean(jnp.square(x - mean), axis=-1, keepdims=True)
    xn = (x - mean) * lax.rsqrt(var + ln_eps) * params["ln_gamma"] + params["ln_beta"]
    q = xn @ params["wq"] + params["bq"]
    k = xn @ params["wk"] + params["bk"]
    v = xn @ params["wv"] + params["bv"]
    q = q.reshape(B, S, num_heads, d).transpose(0, 2, 1, 3)
    k = k.reshape(B, S, num_heads, d).transpose(0, 2, 1, 3)
    v = v.reshape(B, S, num_heads, d).transpose(0, 2, 1, 3)
    scores = jnp.einsum("bhqd,bhkd->bhqk", q, k) / math.sqrt(d)
    probs = jax.nn.softmax(scores, axis=-1)
    ctx = jnp.einsum("bhqk,bhkd->bhqd", probs, v)
    ctx = ctx.transpose(0, 2, 1, 3).reshape(B, S, H)
    out = ctx @ params["wo"] + params["bo"] + x
    return out, probs


if __name__ == "__main__":
    # Small config consistent with the module: hidden=32, heads=4, seq=8, batch=2.
    B, S, H, NH = 2, 8, 32, 4
    key = jax.random.PRNGKey(0)
    k_x, k_p = jax.random.split(key)
    hidden_states = jax.random.normal(k_x, (B, S, H), jnp.float32)
    params = init_params(k_p, H)

    ref_out, ref_probs = reference_jax(hidden_states, params, num_heads=NH)

    # Default fast path: no attention_probs writeback (bf16 exp on v6e/v7x).
    out = roberta_prelayernorm_attention(hidden_states, params, num_heads=NH)
    out = jax.block_until_ready(out)
    assert jnp.allclose(out, ref_out, atol=2e-2, rtol=2e-2), "attention_output mismatch"

    # Explicit probs path (f32 softmax kept for the emitted probabilities).
    out_p, probs = roberta_prelayernorm_attention(hidden_states, params, num_heads=NH,
                                                  output_attentions=True)
    out_p = jax.block_until_ready(out_p)
    probs = jax.block_until_ready(probs)
    assert jnp.allclose(out_p, ref_out, atol=2e-2, rtol=2e-2), "probs-path output mismatch"
    assert jnp.allclose(probs, ref_probs, atol=2e-2, rtol=2e-2), "attention_probs mismatch"

    print("KERNEL_OK")
</pallas_src>

<mosaic_0001>
module attributes {stable_mosaic.version = 11 : i64} {
  func.func @kernel(%arg0: i32, %arg1: i32, %arg2: memref<1x8x32xf32, #tpu.memory_space<vmem>>, %arg3: memref<1x32xf32, #tpu.memory_space<vmem>>, %arg4: memref<1x32xf32, #tpu.memory_space<vmem>>, %arg5: memref<32x96xbf16, #tpu.memory_space<vmem>>, %arg6: memref<1x96xf32, #tpu.memory_space<vmem>>, %arg7: memref<4x8x32xbf16, #tpu.memory_space<vmem>>, %arg8: memref<1x32xf32, #tpu.memory_space<vmem>>, %arg9: memref<1x8x32xf32, #tpu.memory_space<vmem>>, %arg10: memref<4x8x8xbf16, #tpu.memory_space<vmem>>, %arg11: memref<4x8x8xbf16, #tpu.memory_space<vmem>>, %arg12: memref<4x8x8xbf16, #tpu.memory_space<vmem>>) attributes {dimension_semantics = [#tpu.dimension_semantics<parallel>, #tpu.dimension_semantics<arbitrary>], iteration_bounds = array<i64: 2, 1>, scalar_prefetch = 0 : i64, scratch_operands = 3 : i64, tpu.core_type = #tpu.core_type<tc>, window_params = [{transform_indices = @transform_0, window_bounds = array<i64: 1, 8, 32>}, {pipeline_mode = #tpu.pipeline_mode<synchronous>, transform_indices = @transform_1, window_bounds = array<i64: 1, 32>}, {pipeline_mode = #tpu.pipeline_mode<synchronous>, transform_indices = @transform_2, window_bounds = array<i64: 1, 32>}, {pipeline_mode = #tpu.pipeline_mode<synchronous>, transform_indices = @transform_3, window_bounds = array<i64: 32, 96>}, {pipeline_mode = #tpu.pipeline_mode<synchronous>, transform_indices = @transform_4, window_bounds = array<i64: 1, 96>}, {pipeline_mode = #tpu.pipeline_mode<synchronous>, transform_indices = @transform_5, window_bounds = array<i64: 4, 8, 32>}, {pipeline_mode = #tpu.pipeline_mode<synchronous>, transform_indices = @transform_6, window_bounds = array<i64: 1, 32>}, {transform_indices = @transform_7, window_bounds = array<i64: 1, 8, 32>}]} {
    %c0_i32 = arith.constant 0 : i32
    %0 = arith.cmpi eq, %arg1, %c0_i32 : i32
    %1 = arith.extui %0 : i1 to i32
    %c0_i32_0 = arith.constant 0 : i32
    %2 = arith.cmpi ne, %1, %c0_i32_0 : i32
    scf.if %2 {
      %c0_23 = arith.constant 0 : index
      %c0_24 = arith.constant 0 : index
      %c0_25 = arith.constant 0 : index
      %36 = vector.load %arg2[%c0_23, %c0_24, %c0_25] : memref<1x8x32xf32, #tpu.memory_space<vmem>>, vector<1x8x32xf32>
      %37 = vector.shape_cast %36 : vector<1x8x32xf32> to vector<8x32xf32>
      %cst_26 = arith.constant dense<0.000000e+00> : vector<8xf32>
      %38 = vector.multi_reduction <add>, %37, %cst_26 [1] : vector<8x32xf32> to vector<8xf32>
      %39 = vector.shape_cast %38 : vector<8xf32> to vector<8x1xf32>
      %cst_27 = arith.constant 3.200000e+01 : f32
      %40 = vector.broadcast %cst_27 : f32 to vector<8x1xf32>
      %41 = arith.divf %39, %40 : vector<8x1xf32>
      %42 = vector.broadcast %41 : vector<8x1xf32> to vector<8x32xf32>
      %43 = arith.subf %37, %42 : vector<8x32xf32>
      %44 = arith.mulf %43, %43 : vector<8x32xf32>
      %cst_28 = arith.constant dense<0.000000e+00> : vector<8xf32>
      %45 = vector.multi_reduction <add>, %44, %cst_28 [1] : vector<8x32xf32> to vector<8xf32>
      %46 = vector.shape_cast %45 : vector<8xf32> to vector<8x1xf32>
      %cst_29 = arith.constant 3.200000e+01 : f32
      %47 = vector.broadcast %cst_29 : f32 to vector<8x1xf32>
      %48 = arith.divf %46, %47 : vector<8x1xf32>
      %49 = vector.broadcast %41 : vector<8x1xf32> to vector<8x32xf32>
      %50 = arith.subf %37, %49 : vector<8x32xf32>
      %cst_30 = arith.constant 9.99999996E-13 : f32
      %51 = vector.broadcast %cst_30 : f32 to vector<8x1xf32>
      %52 = arith.addf %48, %51 : vector<8x1xf32>
      %53 = math.rsqrt %52 : vector<8x1xf32>
      %54 = vector.broadcast %53 : vector<8x1xf32> to vector<8x32xf32>
      %55 = arith.mulf %50, %54 : vector<8x32xf32>
      %c0_31 = arith.constant 0 : index
      %c0_32 = arith.constant 0 : index
      %56 = vector.load %arg3[%c0_31, %c0_32] : memref<1x32xf32, #tpu.memory_space<vmem>>, vector<1x32xf32>
      %57 = vector.broadcast %56 : vector<1x32xf32> to vector<8x32xf32>
      %58 = arith.mulf %55, %57 : vector<8x32xf32>
      %c0_33 = arith.constant 0 : index
      %c0_34 = arith.constant 0 : index
      %59 = vector.load %arg4[%c0_33, %c0_34] : memref<1x32xf32, #tpu.memory_space<vmem>>, vector<1x32xf32>
      %60 = vector.broadcast %59 : vector<1x32xf32> to vector<8x32xf32>
      %61 = arith.addf %58, %60 : vector<8x32xf32>
      %62 = arith.truncf %61 : vector<8x32xf32> to vector<8x32xbf16>
      %c0_35 = arith.constant 0 : index
      %c0_36 = arith.constant 0 : index
      %63 = vector.load %arg5[%c0_35, %c0_36] : memref<32x96xbf16, #tpu.memory_space<vmem>>, vector<32x96xbf16>
      %cst_37 = arith.constant dense<0.000000e+00> : vector<8x96xf32>
      %64 = tpu.matmul %62, %63, %cst_37 {dimension_numbers = #tpu.dot_dimension_numbers<[1], [0], [0], [1], [0, 0, 1, 1], [], []>} : vector<8x32xbf16>, vector<32x96xbf16>, vector<8x96xf32> -> vector<8x96xf32>
      %c0_38 = arith.constant 0 : index
      %c0_39 = arith.constant 0 : index
      %65 = vector.load %arg6[%c0_38, %c0_39] : memref<1x96xf32, #tpu.memory_space<vmem>>, vector<1x96xf32>
      %66 = vector.broadcast %65 : vector<1x96xf32> to vector<8x96xf32>
      %67 = arith.addf %64, %66 : vector<8x96xf32>
      %68 = vector.extract_strided_slice %67 {offsets = [0, 0], sizes = [8, 8], strides = [1, 1]} : vector<8x96xf32> to vector<8x8xf32>
      %69 = arith.truncf %68 : vector<8x8xf32> to vector<8x8xbf16>
      %c0_40 = arith.constant 0 : index
      %c0_41 = arith.constant 0 : index
      %c0_42 = arith.constant 0 : index
      %70 = vector.load %arg10[%c0_40, %c0_41, %c0_42] : memref<4x8x8xbf16, #tpu.memory_space<vmem>>, vector<1x8x8xbf16>
      %71 = vector.shape_cast %70 : vector<1x8x8xbf16> to vector<8x8xbf16>
      %72 = vector.shape_cast %69 : vector<8x8xbf16> to vector<1x8x8xbf16>
      tpu.vector_store %arg10[%c0_40, %c0_41, %c0_42], %72 {strides = array<i32>} : memref<4x8x8xbf16, #tpu.memory_space<vmem>>, vector<1x8x8xbf16>,
      %73 = vector.extract_strided_slice %67 {offsets = [0, 32], sizes = [8, 8], strides = [1, 1]} : vector<8x96xf32> to vector<8x8xf32>
      %74 = tpu.transpose %73, [1, 0] : vector<8x8xf32> -> vector<8x8xf32>
      %75 = arith.truncf %74 : vector<8x8xf32> to vector<8x8xbf16>
      %c0_43 = arith.constant 0 : index
      %c0_44 = arith.constant 0 : index
      %c0_45 = arith.constant 0 : index
      %76 = vector.load %arg11[%c0_43, %c0_44, %c0_45] : memref<4x8x8xbf16, #tpu.memory_space<vmem>>, vector<1x8x8xbf16>
      %77 = vector.shape_cast %76 : vector<1x8x8xbf16> to vector<8x8xbf16>
      %78 = vector.shape_cast %75 : vector<8x8xbf16> to vector<1x8x8xbf16>
      tpu.vector_store %arg11[%c0_43, %c0_44, %c0_45], %78 {strides = array<i32>} : memref<4x8x8xbf16, #tpu.memory_space<vmem>>, vector<1x8x8xbf16>,
      %79 = vector.extract_strided_slice %67 {offsets = [0, 64], sizes = [8, 8], strides = [1, 1]} : vector<8x96xf32> to vector<8x8xf32>
      %80 = arith.truncf %79 : vector<8x8xf32> to vector<8x8xbf16>
      %c0_46 = arith.constant 0 : index
      %c0_47 = arith.constant 0 : index
      %c0_48 = arith.constant 0 : index
      %81 = vector.load %arg12[%c0_46, %c0_47, %c0_48] : memref<4x8x8xbf16, #tpu.memory_space<vmem>>, vector<1x8x8xbf16>
      %82 = vector.shape_cast %81 : vector<1x8x8xbf16> to vector<8x8xbf16>
      %83 = vector.shape_cast %80 : vector<8x8xbf16> to vector<1x8x8xbf16>
      tpu.vector_store %arg12[%c0_46, %c0_47, %c0_48], %83 {strides = array<i32>} : memref<4x8x8xbf16, #tpu.memory_space<vmem>>, vector<1x8x8xbf16>,
      %84 = vector.extract_strided_slice %67 {offsets = [0, 8], sizes = [8, 8], strides = [1, 1]} : vector<8x96xf32> to vector<8x8xf32>
      %85 = arith.truncf %84 : vector<8x8xf32> to vector<8x8xbf16>
      %c1 = arith.constant 1 : index
      %c0_49 = arith.constant 0 : index
      %c0_50 = arith.constant 0 : index
      %86 = vector.load %arg10[%c1, %c0_49, %c0_50] : memref<4x8x8xbf16, #tpu.memory_space<vmem>>, vector<1x8x8xbf16>
      %87 = vector.shape_cast %86 : vector<1x8x8xbf16> to vector<8x8xbf16>
      %88 = vector.shape_cast %85 : vector<8x8xbf16> to vector<1x8x8xbf16>
      tpu.vector_store %arg10[%c1, %c0_49, %c0_50], %88 {strides = array<i32>} : memref<4x8x8xbf16, #tpu.memory_space<vmem>>, vector<1x8x8xbf16>,
      %89 = vector.extract_strided_slice %67 {offsets = [0, 40], sizes = [8, 8], strides = [1, 1]} : vector<8x96xf32> to vector<8x8xf32>
      %90 = tpu.transpose %89, [1, 0] : vector<8x8xf32> -> vector<8x8xf32>
      %91 = arith.truncf %90 : vector<8x8xf32> to vector<8x8xbf16>
      %c1_51 = arith.constant 1 : index
      %c0_52 = arith.constant 0 : index
      %c0_53 = arith.constant 0 : index
      %92 = vector.load %arg11[%c1_51, %c0_52, %c0_53] : memref<4x8x8xbf16, #tpu.memory_space<vmem>>, vector<1x8x8xbf16>
      %93 = vector.shape_cast %92 : vector<1x8x8xbf16> to vector<8x8xbf16>
      %94 = vector.shape_cast %91 : vector<8x8xbf16> to vector<1x8x8xbf16>
      tpu.vector_store %arg11[%c1_51, %c0_52, %c0_53], %94 {strides = array<i32>} : memref<4x8x8xbf16, #tpu.memory_space<vmem>>, vector<1x8x8xbf16>,
      %95 = vector.extract_strided_slice %67 {offsets = [0, 72], sizes = [8, 8], strides = [1, 1]} : vector<8x96xf32> to vector<8x8xf32>
      %96 = arith.truncf %95 : vector<8x8xf32> to vector<8x8xbf16>
      %c1_54 = arith.constant 1 : index
      %c0_55 = arith.constant 0 : index
      %c0_56 = arith.constant 0 : index
      %97 = vector.load %arg12[%c1_54, %c0_55, %c0_56] : memref<4x8x8xbf16, #tpu.memory_space<vmem>>, vector<1x8x8xbf16>
      %98 = vector.shape_cast %97 : vector<1x8x8xbf16> to vector<8x8xbf16>
      %99 = vector.shape_cast %96 : vector<8x8xbf16> to vector<1x8x8xbf16>
      tpu.vector_store %arg12[%c1_54, %c0_55, %c0_56], %99 {strides = array<i32>} : memref<4x8x8xbf16, #tpu.memory_space<vmem>>, vector<1x8x8xbf16>,
      %100 = vector.extract_strided_slice %67 {offsets = [0, 16], sizes = [8, 8], strides = [1, 1]} : vector<8x96xf32> to vector<8x8xf32>
      %101 = arith.truncf %100 : vector<8x8xf32> to vector<8x8xbf16>
      %c2 = arith.constant 2 : index
      %c0_57 = arith.constant 0 : index
      %c0_58 = arith.constant 0 : index
      %102 = vector.load %arg10[%c2, %c0_57, %c0_58] : memref<4x8x8xbf16, #tpu.memory_space<vmem>>, vector<1x8x8xbf16>
      %103 = vector.shape_cast %102 : vector<1x8x8xbf16> to vector<8x8xbf16>
      %104 = vector.shape_cast %101 : vector<8x8xbf16> to vector<1x8x8xbf16>
      tpu.vector_store %arg10[%c2, %c0_57, %c0_58], %104 {strides = array<i32>} : memref<4x8x8xbf16, #tpu.memory_space<vmem>>, vector<1x8x8xbf16>,
      %105 = vector.extract_strided_slice %67 {offsets = [0, 48], sizes = [8, 8], strides = [1, 1]} : vector<8x96xf32> to vector<8x8xf32>
      %106 = tpu.transpose %105, [1, 0] : vector<8x8xf32> -> vector<8x8xf32>
      %107 = arith.truncf %106 : vector<8x8xf32> to vector<8x8xbf16>
      %c2_59 = arith.constant 2 : index
      %c0_60 = arith.constant 0 : index
      %c0_61 = arith.constant 0 : index
      %108 = vector.load %arg11[%c2_59, %c0_60, %c0_61] : memref<4x8x8xbf16, #tpu.memory_space<vmem>>, vector<1x8x8xbf16>
      %109 = vector.shape_cast %108 : vector<1x8x8xbf16> to vector<8x8xbf16>
      %110 = vector.shape_cast %107 : vector<8x8xbf16> to vector<1x8x8xbf16>
      tpu.vector_store %arg11[%c2_59, %c0_60, %c0_61], %110 {strides = array<i32>} : memref<4x8x8xbf16, #tpu.memory_space<vmem>>, vector<1x8x8xbf16>,
      %111 = vector.extract_strided_slice %67 {offsets = [0, 80], sizes = [8, 8], strides = [1, 1]} : vector<8x96xf32> to vector<8x8xf32>
      %112 = arith.truncf %111 : vector<8x8xf32> to vector<8x8xbf16>
      %c2_62 = arith.constant 2 : index
      %c0_63 = arith.constant 0 : index
      %c0_64 = arith.constant 0 : index
      %113 = vector.load %arg12[%c2_62, %c0_63, %c0_64] : memref<4x8x8xbf16, #tpu.memory_space<vmem>>, vector<1x8x8xbf16>
      %114 = vector.shape_cast %113 : vector<1x8x8xbf16> to vector<8x8xbf16>
      %115 = vector.shape_cast %112 : vector<8x8xbf16> to vector<1x8x8xbf16>
      tpu.vector_store %arg12[%c2_62, %c0_63, %c0_64], %115 {strides = array<i32>} : memref<4x8x8xbf16, #tpu.memory_space<vmem>>, vector<1x8x8xbf16>,
      %116 = vector.extract_strided_slice %67 {offsets = [0, 24], sizes = [8, 8], strides = [1, 1]} : vector<8x96xf32> to vector<8x8xf32>
      %117 = arith.truncf %116 : vector<8x8xf32> to vector<8x8xbf16>
      %c3 = arith.constant 3 : index
      %c0_65 = arith.constant 0 : index
      %c0_66 = arith.constant 0 : index
      %118 = vector.load %arg10[%c3, %c0_65, %c0_66] : memref<4x8x8xbf16, #tpu.memory_space<vmem>>, vector<1x8x8xbf16>
      %119 = vector.shape_cast %118 : vector<1x8x8xbf16> to vector<8x8xbf16>
      %120 = vector.shape_cast %117 : vector<8x8xbf16> to vector<1x8x8xbf16>
      tpu.vector_store %arg10[%c3, %c0_65, %c0_66], %120 {strides = array<i32>} : memref<4x8x8xbf16, #tpu.memory_space<vmem>>, vector<1x8x8xbf16>,
      %121 = vector.extract_strided_slice %67 {offsets = [0, 56], sizes = [8, 8], strides = [1, 1]} : vector<8x96xf32> to vector<8x8xf32>
      %122 = tpu.transpose %121, [1, 0] : vector<8x8xf32> -> vector<8x8xf32>
      %123 = arith.truncf %122 : vector<8x8xf32> to vector<8x8xbf16>
      %c3_67 = arith.constant 3 : index
      %c0_68 = arith.constant 0 : index
      %c0_69 = arith.constant 0 : index
      %124 = vector.load %arg11[%c3_67, %c0_68, %c0_69] : memref<4x8x8xbf16, #tpu.memory_space<vmem>>, vector<1x8x8xbf16>
      %125 = vector.shape_cast %124 : vector<1x8x8xbf16> to vector<8x8xbf16>
      %126 = vector.shape_cast %123 : vector<8x8xbf16> to vector<1x8x8xbf16>
      tpu.vector_store %arg11[%c3_67, %c0_68, %c0_69], %126 {strides = array<i32>} : memref<4x8x8xbf16, #tpu.memory_space<vmem>>, vector<1x8x8xbf16>,
      %127 = vector.extract_strided_slice %67 {offsets = [0, 88], sizes = [8, 8], strides = [1, 1]} : vector<8x96xf32> to vector<8x8xf32>
      %128 = arith.truncf %127 : vector<8x8xf32> to vector<8x8xbf16>
      %c3_70 = arith.constant 3 : index
      %c0_71 = arith.constant 0 : index
      %c0_72 = arith.constant 0 : index
      %129 = vector.load %arg12[%c3_70, %c0_71, %c0_72] : memref<4x8x8xbf16, #tpu.memory_space<vmem>>, vector<1x8x8xbf16>
      %130 = vector.shape_cast %129 : vector<1x8x8xbf16> to vector<8x8xbf16>
      %131 = vector.shape_cast %128 : vector<8x8xbf16> to vector<1x8x8xbf16>
      tpu.vector_store %arg12[%c3_70, %c0_71, %c0_72], %131 {strides = array<i32>} : memref<4x8x8xbf16, #tpu.memory_space<vmem>>, vector<1x8x8xbf16>,
    } else {
    }
    %c8_i32 = arith.constant 8 : i32
    %3 = arith.muli %arg1, %c8_i32 : i32
    %4 = tpu.assume_multiple %3, 8 : i32
    %c0 = arith.constant 0 : index
    %5 = arith.index_cast %4 : i32 to index
    %c0_1 = arith.constant 0 : index
    %6 = vector.load %arg10[%c0, %5, %c0_1] : memref<4x8x8xbf16, #tpu.memory_space<vmem>>, vector<4x8x8xbf16>
    %c0_2 = arith.constant 0 : index
    %c0_3 = arith.constant 0 : index
    %c0_4 = arith.constant 0 : index
    %7 = vector.load %arg11[%c0_2, %c0_3, %c0_4] : memref<4x8x8xbf16, #tpu.memory_space<vmem>>, vector<4x8x8xbf16>
    %c0_5 = arith.constant 0 : index
    %c0_6 = arith.constant 0 : index
    %c0_7 = arith.constant 0 : index
    %8 = vector.load %arg12[%c0_5, %c0_6, %c0_7] : memref<4x8x8xbf16, #tpu.memory_space<vmem>>, vector<4x8x8xbf16>
    %cst = arith.constant dense<0.000000e+00> : vector<4x8x8xf32>
    %9 = tpu.matmul %6, %7, %cst {dimension_numbers = #tpu.dot_dimension_numbers<[2], [1], [1], [2], [0, 0, 0, 1, 1, 2], [0], [0]>} : vector<4x8x8xbf16>, vector<4x8x8xbf16>, vector<4x8x8xf32> -> vector<4x8x8xf32>
    %cst_8 = arith.constant dense<0xFF800000> : vector<4x8xf32>
    %10 = vector.multi_reduction <maximumf>, %9, %cst_8 [2] : vector<4x8x8xf32> to vector<4x8xf32>
    %11 = vector.shape_cast %10 : vector<4x8xf32> to vector<4x8x1xf32>
    %12 = vector.broadcast %11 : vector<4x8x1xf32> to vector<4x8x8xf32>
    %13 = arith.subf %9, %12 : vector<4x8x8xf32>
    %14 = math.exp %13 : vector<4x8x8xf32>
    %cst_9 = arith.constant dense<0.000000e+00> : vector<4x8xf32>
    %15 = vector.multi_reduction <add>, %14, %cst_9 [2] : vector<4x8x8xf32> to vector<4x8xf32>
    %16 = vector.shape_cast %15 : vector<4x8xf32> to vector<4x8x1xf32>
    %17 = tpu.reciprocal %16 {approx = true} : vector<4x8x1xf32> -> vector<4x8x1xf32>
    %18 = vector.broadcast %17 : vector<4x8x1xf32> to vector<4x8x8xf32>
    %19 = arith.mulf %14, %18 : vector<4x8x8xf32>
    %20 = arith.truncf %19 : vector<4x8x8xf32> to vector<4x8x8xbf16>
    %cst_10 = arith.constant dense<0.000000e+00> : vector<4x8x8xf32>
    %21 = tpu.matmul %20, %8, %cst_10 {dimension_numbers = #tpu.dot_dimension_numbers<[2], [1], [1], [2], [0, 0, 0, 1, 1, 2], [0], [0]>} : vector<4x8x8xbf16>, vector<4x8x8xbf16>, vector<4x8x8xf32> -> vector<4x8x8xf32>
    %22 = arith.truncf %21 : vector<4x8x8xf32> to vector<4x8x8xbf16>
    %c0_11 = arith.constant 0 : index
    %c0_12 = arith.constant 0 : index
    %c0_13 = arith.constant 0 : index
    %23 = vector.load %arg7[%c0_11, %c0_12, %c0_13] : memref<4x8x32xbf16, #tpu.memory_space<vmem>>, vector<4x8x32xbf16>
    %cst_14 = arith.constant dense<0.000000e+00> : vector<4x8x32xf32>
    %24 = tpu.matmul %22, %23, %cst_14 {dimension_numbers = #tpu.dot_dimension_numbers<[2], [1], [1], [2], [0, 0, 0, 1, 1, 2], [0], [0]>} : vector<4x8x8xbf16>, vector<4x8x32xbf16>, vector<4x8x32xf32> -> vector<4x8x32xf32>
    %cst_15 = arith.constant dense<0.000000e+00> : vector<8x32xf32>
    %25 = vector.multi_reduction <add>, %24, %cst_15 [0] : vector<4x8x32xf32> to vector<8x32xf32>
    %c0_16 = arith.constant 0 : index
    %c0_17 = arith.constant 0 : index
    %26 = vector.load %arg8[%c0_16, %c0_17] : memref<1x32xf32, #tpu.memory_space<vmem>>, vector<1x32xf32>
    %27 = vector.broadcast %26 : vector<1x32xf32> to vector<8x32xf32>
    %28 = arith.addf %25, %27 : vector<8x32xf32>
    %c0_18 = arith.constant 0 : index
    %29 = arith.index_cast %4 : i32 to index
    %c0_19 = arith.constant 0 : index
    %30 = vector.load %arg2[%c0_18, %29, %c0_19] : memref<1x8x32xf32, #tpu.memory_space<vmem>>, vector<1x8x32xf32>
    %31 = vector.shape_cast %30 : vector<1x8x32xf32> to vector<8x32xf32>
    %32 = arith.addf %28, %31 : vector<8x32xf32>
    %c0_20 = arith.constant 0 : index
    %c0_21 = arith.constant 0 : index
    %c0_22 = arith.constant 0 : index
    %33 = vector.load %arg9[%c0_20, %c0_21, %c0_22] : memref<1x8x32xf32, #tpu.memory_space<vmem>>, vector<1x8x32xf32>
    %34 = vector.shape_cast %33 : vector<1x8x32xf32> to vector<8x32xf32>
    %35 = vector.shape_cast %32 : vector<8x32xf32> to vector<1x8x32xf32>
    tpu.vector_store %arg9[%c0_20, %c0_21, %c0_22], %35 {strides = array<i32>} : memref<1x8x32xf32, #tpu.memory_space<vmem>>, vector<1x8x32xf32>,
    return
  }
  func.func @transform_0(%arg0: i32, %arg1: i32) -> (i32, i32, i32) {
    %c0_i32 = arith.constant 0 : i32
    %c0_i32_0 = arith.constant 0 : i32
    %c0_i32_1 = arith.constant 0 : i32
    return %arg0, %c0_i32, %c0_i32_0 : i32, i32, i32
  }
  func.func @transform_1(%arg0: i32, %arg1: i32) -> (i32, i32) {
    %c0_i32 = arith.constant 0 : i32
    %c0_i32_0 = arith.constant 0 : i32
    %c0_i32_1 = arith.constant 0 : i32
    return %c0_i32, %c0_i32_0 : i32, i32
  }
  func.func @transform_2(%arg0: i32, %arg1: i32) -> (i32, i32) {
    %c0_i32 = arith.constant 0 : i32
    %c0_i32_0 = arith.constant 0 : i32
    %c0_i32_1 = arith.constant 0 : i32
    return %c0_i32, %c0_i32_0 : i32, i32
  }
  func.func @transform_3(%arg0: i32, %arg1: i32) -> (i32, i32) {
    %c0_i32 = arith.constant 0 : i32
    %c0_i32_0 = arith.constant 0 : i32
    %c0_i32_1 = arith.constant 0 : i32
    return %c0_i32, %c0_i32_0 : i32, i32
  }
  func.func @transform_4(%arg0: i32, %arg1: i32) -> (i32, i32) {
    %c0_i32 = arith.constant 0 : i32
    %c0_i32_0 = arith.constant 0 : i32
    %c0_i32_1 = arith.constant 0 : i32
    return %c0_i32, %c0_i32_0 : i32, i32
  }
  func.func @transform_5(%arg0: i32, %arg1: i32) -> (i32, i32, i32) {
    %c0_i32 = arith.constant 0 : i32
    %c0_i32_0 = arith.constant 0 : i32
    %c0_i32_1 = arith.constant 0 : i32
    %c0_i32_2 = arith.constant 0 : i32
    return %c0_i32, %c0_i32_0, %c0_i32_1 : i32, i32, i32
  }
  func.func @transform_6(%arg0: i32, %arg1: i32) -> (i32, i32) {
    %c0_i32 = arith.constant 0 : i32
    %c0_i32_0 = arith.constant 0 : i32
    %c0_i32_1 = arith.constant 0 : i32
    return %c0_i32, %c0_i32_0 : i32, i32
  }
  func.func @transform_7(%arg0: i32, %arg1: i32) -> (i32, i32, i32) {
    %c0_i32 = arith.constant 0 : i32
    %c0_i32_0 = arith.constant 0 : i32
    return %arg0, %arg1, %c0_i32 : i32, i32, i32
  }
}

</mosaic_0001>

<llo_original>
// kernel: tpu_custom_call.1
$region0: #{tpu_custom_call.1}
  #allocation0 [shape = 'u32[]', space=smem, size = 0x4, offset = 0x4, fixed_abs, tag = 'smem constant byte address 0x4 - core index']
  #allocation1 [shape = 'u32[144,128]{1,0:T(1,128)}', space=vmem, size = 0x12000, scoped, tag = 'internal scratch']
  #allocation2 [shape = 'bf16[4,8,8]{2,1,0:T(8,128)(2,1)}', space=vmem, size = 0x2000, scoped, tag = 'scratch operand']
  #allocation3 [shape = 'bf16[4,8,8]{2,1,0:T(8,128)(2,1)}', space=vmem, size = 0x2000, scoped, tag = 'scratch operand']
  #allocation4 [shape = 'bf16[4,8,8]{2,1,0:T(8,128)(2,1)}', space=vmem, size = 0x2000, scoped, tag = 'scratch operand']
  %s0 = inlined_call_operand.hbm [shape: f32[2,8,32], index: 0, kind: input, shape index: {}]
  %s1 = inlined_call_operand.vmem [shape: f32[1,32], index: 1, kind: input, shape index: {}]
  %s2 = inlined_call_operand.vmem [shape: f32[1,32], index: 2, kind: input, shape index: {}]
  %s3 = inlined_call_operand.hbm [shape: bf16[32,96], index: 3, kind: input, shape index: {}]
  %s4 = inlined_call_operand.hbm [shape: f32[1,96], index: 4, kind: input, shape index: {}]
  %s5 = inlined_call_operand.vmem [shape: bf16[4,8,32], index: 5, kind: input, shape index: {}]
  %s6 = inlined_call_operand.vmem [shape: f32[1,32], index: 6, kind: input, shape index: {}]
  %s7 = inlined_call_operand.hbm [shape: f32[2,8,32], index: 7, kind: output, shape index: {}]
  %s8 = sld [smem:[#allocation0]]
  $region77: #{tpu_custom_call.1} parent=0
    _
  %s10 = ssub.s32 1, %s8
  %s11 = scalar_select 0, %s10, %s8
  $region1: #{tpu_custom_call.1} parent=0
    #allocation5 [shape = 'u8[8192]{0}', space=vmem, size = 0x2000, scoped, tag = 'input window, operand 0']
    #allocation6 [shape = 's32[2]{0}', space=sflag, size = 0x8, scoped, tag = 'scoped memory for tpu_custom_call.1']
    #allocation7 [shape = 's32[2]{0}', space=sflag, size = 0x8, scoped, tag = 'scoped memory for tpu_custom_call.1']
    #allocation8 [shape = 'u8[8192]{0}', space=vmem, size = 0x2000, scoped, tag = 'input window, operand 3, single buffered']
    #allocation9 [shape = 's32[1]{0}', space=sflag, size = 0x4, scoped, tag = 'scoped memory for tpu_custom_call.1']
    #allocation10 [shape = 'u8[512]{0}', space=vmem, size = 0x400, scoped, tag = 'input window, operand 4, single buffered']
    #allocation11 [shape = 'u8[8192]{0}', space=vmem, size = 0x2000, scoped, tag = 'output window, operand 0']
    %12 = vsyncpa [#allocation6], 0
    %s13 = scalar_lea.sflag [#allocation6], 1
    %14 = vsyncpa %s13, 0
    %15 = vsyncpa [#allocation9], 0
    %16 = vsyncpa [#allocation7], 0
    %s17 = scalar_lea.sflag [#allocation7], 1
    %18 = vsyncpa %s17, 0
    loop: start=0, step=1, limit=4
    $region2: #{tpu_custom_call.1} parent=1 // loop_pre_header
      _
    $region3: #{tpu_custom_call.1} parent=1 // loop_header
      %s20 = sphi 0, %s24
      %p21 = scmp.ge.s32.totalorder %s20, 4
      %s27 = sphi 0, %s39
      %s28 = sphi 0, %s35
      %s29 = sphi 0, %s27
      %s30 = sphi 0, %s28
      %s31 = sphi 0, %s29
      %s32 = sphi 0, %s30
      %s42 = sphi 0, %s44
      %s45 = sphi 0, %s42
      %s46 = sphi 0, %s45
      %s62 = sphi 0, %s46
      %s66 = sphi 0, %s66
      %s68 = sphi 0, %s66
      %s69 = sphi 0, %s68
      %s83 = sphi 0, %s69
      %s87 = sphi 0, %s87
      %s89 = sphi 0, %s87
      %s90 = sphi 0, %s89
      %s104 = sphi 0, %s90
      %s108 = sphi 0, %s108
      %s110 = sphi 0, %s108
      %s111 = sphi 0, %s110
      %s125 = sphi 0, %s111
      %s129 = sphi 0, %s129
      %s131 = sphi 0, %s129
      %s132 = sphi 0, %s131
      %s146 = sphi 0, %s132
      %s150 = sphi 0, %s150
      %s152 = sphi 0, %s150
      %s153 = sphi 0, %s152
      %s167 = sphi 0, %s153
      %s171 = sphi 0, %s171
      %s173 = sphi 0, %s171
      %s174 = sphi 0, %s173
      %s188 = sphi 0, %s174
      %s196 = sphi 0, %s198
      %s199 = sphi 0, %s196
      %s200 = sphi 0, %s199
      %s216 = sphi 0, %s200
    $region4: #{tpu_custom_call.1} parent=1 // loop_header_branch
      %23 = sbr.rel (%p21) target = $region8
    $region5: #{tpu_custom_call.1} parent=1 // loop_body
      %s25 = ssub.s32 %s20, 1
      %s26 = ssub.s32 %s20, 2
      %s33 = sadd.s32 1, %s28
      %p34 = scmp.ge.s32.totalorder %s33, 1
      %s35 = scalar_select %p34, 0, %s33
      %s36 = sadd.s32 1, %s27
      %s37 = scalar_select %p34, %s36, %s27
      %p38 = scmp.ge.s32.totalorder %s37, 2
      %s39 = scalar_select %p38, 0, %s37
      %s40 = ssub.s32 %s27, %s39
      %p41 = scmp.eq.s32.totalorder %s40, 0
      %s43 = sadd.s32 %s42, 1
      %s44 = scalar_select %p41, %s42, %s43
      %p47 = pneg %p41
      %p48 = scmp.eq.s32.totalorder %s20, 1
      %p49 = por %p47, %p48
      %p50 = scmp.ne.s32.totalorder %s42, %s45
      %p51 = scmp.eq.s32.totalorder %s20, 0
      %p52 = por %p50, %p51
      %p53 = scmp.ne.s32.totalorder %s42, %s45
      %p54 = scmp.eq.s32.totalorder %s25, 1
      %p55 = por %p53, %p54
      %p56 = scmp.ne.s32.totalorder %s45, %s46
      %p57 = scmp.eq.s32.totalorder %s25, 0
      %p58 = por %p56, %p57
      %p59 = scmp.ne.s32.totalorder %s45, %s46
      %p60 = scmp.eq.s32.totalorder %s26, 1
      %p61 = por %p59, %p60
      %p63 = scmp.ne.s32.totalorder %s46, %s62
      %p64 = scmp.eq.s32.totalorder %s26, 0
      %p65 = por %p63, %p64
      %s67 = sadd.s32 %s66, 1
      %p70 = scmp.eq.s32.totalorder %s20, 1
      %p71 = scmp.ne.s32.totalorder %s66, %s68
      %p72 = scmp.eq.s32.totalorder %s20, 0
      %p73 = por %p71, %p72
      %p74 = scmp.ne.s32.totalorder %s66, %s68
      %p75 = scmp.eq.s32.totalorder %s25, 1
      %p76 = por %p74, %p75
      %p77 = scmp.ne.s32.totalorder %s68, %s69
      %p78 = scmp.eq.s32.totalorder %s25, 0
      %p79 = por %p77, %p78
      %p80 = scmp.ne.s32.totalorder %s68, %s69
      %p81 = scmp.eq.s32.totalorder %s26, 1
      %p82 = por %p80, %p81
      %p84 = scmp.ne.s32.totalorder %s69, %s83
      %p85 = scmp.eq.s32.totalorder %s26, 0
      %p86 = por %p84, %p85
      %s88 = sadd.s32 %s87, 1
      %p91 = scmp.eq.s32.totalorder %s20, 1
      %p92 = scmp.ne.s32.totalorder %s87, %s89
      %p93 = scmp.eq.s32.totalorder %s20, 0
      %p94 = por %p92, %p93
      %p95 = scmp.ne.s32.totalorder %s87, %s89
      %p96 = scmp.eq.s32.totalorder %s25, 1
      %p97 = por %p95, %p96
      %p98 = scmp.ne.s32.totalorder %s89, %s90
      %p99 = scmp.eq.s32.totalorder %s25, 0
      %p100 = por %p98, %p99
      %p101 = scmp.ne.s32.totalorder %s89, %s90
      %p102 = scmp.eq.s32.totalorder %s26, 1
      %p103 = por %p101, %p102
      %p105 = scmp.ne.s32.totalorder %s90, %s104
      %p106 = scmp.eq.s32.totalorder %s26, 0
      %p107 = por %p105, %p106
      %s109 = sadd.s32 %s108, 1
      %p112 = scmp.eq.s32.totalorder %s20, 1
      %p113 = scmp.ne.s32.totalorder %s108, %s110
      %p114 = scmp.eq.s32.totalorder %s20, 0
      %p115 = por %p113, %p114
      %p116 = scmp.ne.s32.totalorder %s108, %s110
      %p117 = scmp.eq.s32.totalorder %s25, 1
      %p118 = por %p116, %p117
      %p119 = scmp.ne.s32.totalorder %s110, %s111
      %p120 = scmp.eq.s32.totalorder %s25, 0
      %p121 = por %p119, %p120
      %p122 = scmp.ne.s32.totalorder %s110, %s111
      %p123 = scmp.eq.s32.totalorder %s26, 1
      %p124 = por %p122, %p123
      %p126 = scmp.ne.s32.totalorder %s111, %s125
      %p127 = scmp.eq.s32.totalorder %s26, 0
      %p128 = por %p126, %p127
      %s130 = sadd.s32 %s129, 1
      %p133 = scmp.eq.s32.totalorder %s20, 1
      %p134 = scmp.ne.s32.totalorder %s129, %s131
      %p135 = scmp.eq.s32.totalorder %s20, 0
      %p136 = por %p134, %p135
      %p137 = scmp.ne.s32.totalorder %s129, %s131
      %p138 = scmp.eq.s32.totalorder %s25, 1
      %p139 = por %p137, %p138
      %p140 = scmp.ne.s32.totalorder %s131, %s132
      %p141 = scmp.eq.s32.totalorder %s25, 0
      %p142 = por %p140, %p141
      %p143 = scmp.ne.s32.totalorder %s131, %s132
      %p144 = scmp.eq.s32.totalorder %s26, 1
      %p145 = por %p143, %p144
      %p147 = scmp.ne.s32.totalorder %s132, %s146
      %p148 = scmp.eq.s32.totalorder %s26, 0
      %p149 = por %p147, %p148
      %s151 = sadd.s32 %s150, 1
      %p154 = scmp.eq.s32.totalorder %s20, 1
      %p155 = scmp.ne.s32.totalorder %s150, %s152
      %p156 = scmp.eq.s32.totalorder %s20, 0
      %p157 = por %p155, %p156
      %p158 = scmp.ne.s32.totalorder %s150, %s152
      %p159 = scmp.eq.s32.totalorder %s25, 1
      %p160 = por %p158, %p159
      %p161 = scmp.ne.s32.totalorder %s152, %s153
      %p162 = scmp.eq.s32.totalorder %s25, 0
      %p163 = por %p161, %p162
      %p164 = scmp.ne.s32.totalorder %s152, %s153
      %p165 = scmp.eq.s32.totalorder %s26, 1
      %p166 = por %p164, %p165
      %p168 = scmp.ne.s32.totalorder %s153, %s167
      %p169 = scmp.eq.s32.totalorder %s26, 0
      %p170 = por %p168, %p169
      %s172 = sadd.s32 %s171, 1
      %p175 = scmp.eq.s32.totalorder %s20, 1
      %p176 = scmp.ne.s32.totalorder %s171, %s173
      %p177 = scmp.eq.s32.totalorder %s20, 0
      %p178 = por %p176, %p177
      %p179 = scmp.ne.s32.totalorder %s171, %s173
      %p180 = scmp.eq.s32.totalorder %s25, 1
      %p181 = por %p179, %p180
      %p182 = scmp.ne.s32.totalorder %s173, %s174
      %p183 = scmp.eq.s32.totalorder %s25, 0
      %p184 = por %p182, %p183
      %p185 = scmp.ne.s32.totalorder %s173, %s174
      %p186 = scmp.eq.s32.totalorder %s26, 1
      %p187 = por %p185, %p186
      %p189 = scmp.ne.s32.totalorder %s174, %s188
      %p190 = scmp.eq.s32.totalorder %s26, 0
      %p191 = por %p189, %p190
      %s192 = ssub.s32 %s27, %s39
      %s193 = ssub.s32 %s28, %s35
      %s194 = sor.u32 %s192, %s193
      %p195 = scmp.eq.s32.totalorder %s194, 0
      %s197 = sadd.s32 %s196, 1
      %s198 = scalar_select %p195, %s196, %s197
      %p201 = pneg %p195
      %p202 = scmp.eq.s32.totalorder %s20, 1
      %p203 = por %p201, %p202
      %p204 = scmp.ne.s32.totalorder %s196, %s199
      %p205 = scmp.eq.s32.totalorder %s20, 0
      %p206 = por %p204, %p205
      %p207 = scmp.ne.s32.totalorder %s196, %s199
      %p208 = scmp.eq.s32.totalorder %s25, 1
      %p209 = por %p207, %p208
      %p210 = scmp.ne.s32.totalorder %s199, %s200
      %p211 = scmp.eq.s32.totalorder %s25, 0
      %p212 = por %p210, %p211
      %p213 = scmp.ne.s32.totalorder %s199, %s200
      %p214 = scmp.eq.s32.totalorder %s26, 1
      %p215 = por %p213, %p214
      %p217 = scmp.ne.s32.totalorder %s200, %s216
      %p218 = scmp.eq.s32.totalorder %s26, 0
      %p219 = por %p217, %p218
      %p220 = scmp.le.s32.totalorder 1, %s20
      %p221 = scmp.lt.s32.totalorder %s20, 3
      %p222 = pnand %p220, %p221
      %p223 = pneg %p222
      // Predicated region
      $region9: #{tpu_custom_call.1} parent=5 // pred_check
        _
      $region10: #{tpu_custom_call.1} parent=5 // pred_check_branch
        %225 = sbr.rel (%p222) target = $region12
      $region11: #{tpu_custom_call.1} parent=5 // pred_region
        %s226 = ssub.s32 %s20, 1
        // Predicated region
        $region13: #{tpu_custom_call.1} parent=11 // pred_check
          %p227 = pneg %p79
        $region14: #{tpu_custom_call.1} parent=11 // pred_check_branch
          %229 = sbr.rel (%p227) target = $region16
        $region15: #{tpu_custom_call.1} parent=11 // pred_region
          _
        $region16: #{tpu_custom_call.1} parent=11 // pred_fallthru
          _
        // Predicated region
        $region17: #{tpu_custom_call.1} parent=11 // pred_check
          %p230 = pneg %p100
        $region18: #{tpu_custom_call.1} parent=11 // pred_check_branch
          %232 = sbr.rel (%p230) target = $region20
        $region19: #{tpu_custom_call.1} parent=11 // pred_region
          _
        $region20: #{tpu_custom_call.1} parent=11 // pred_fallthru
          _
        // Predicated region
        $region21: #{tpu_custom_call.1} parent=11 // pred_check
          %p233 = pneg %p121
        $region22: #{tpu_custom_call.1} parent=11 // pred_check_branch
          %235 = sbr.rel (%p233) target = $region24
        $region23: #{tpu_custom_call.1} parent=11 // pred_region
          %s237 = ssub.s32 256, 256
          %238 = vsyncadd [#allocation9], %s237
          %s239 = sshll.u32 [#allocation8], 4
          %s240 = int_to_ptr.vmem [resolvable:$true] %s239
          %245 = dma.hbm_to_vmem [thread:$0]  %s3, 256, %s240, [#allocation9], 64, 64, 4
        $region24: #{tpu_custom_call.1} parent=11 // pred_fallthru
          _
        // Predicated region
        $region25: #{tpu_custom_call.1} parent=11 // pred_check
          %p246 = pneg %p142
        $region26: #{tpu_custom_call.1} parent=11 // pred_check_branch
          %248 = sbr.rel (%p246) target = $region28
        $region27: #{tpu_custom_call.1} parent=11 // pred_region
          %s250 = ssub.s32 16, 16
          %251 = vsyncadd [#allocation9], %s250
          %s253 = sshll.u32 [#allocation10], 4
          %s254 = int_to_ptr.vmem [resolvable:$true] %s253
          %256 = dma.hbm_to_vmem [thread:$0]  %s4, 16, %s254, [#allocation9]
        $region28: #{tpu_custom_call.1} parent=11 // pred_fallthru
          _
        // Predicated region
        $region29: #{tpu_custom_call.1} parent=11 // pred_check
          %p257 = pneg %p163
        $region30: #{tpu_custom_call.1} parent=11 // pred_check_branch
          %259 = sbr.rel (%p257) target = $region32
        $region31: #{tpu_custom_call.1} parent=11 // pred_region
          _
        $region32: #{tpu_custom_call.1} parent=11 // pred_fallthru
          _
        // Predicated region
        $region33: #{tpu_custom_call.1} parent=11 // pred_check
          %p260 = pneg %p184
        $region34: #{tpu_custom_call.1} parent=11 // pred_check_branch
          %262 = sbr.rel (%p260) target = $region36
        $region35: #{tpu_custom_call.1} parent=11 // pred_region
          _
        $region36: #{tpu_custom_call.1} parent=11 // pred_fallthru
          _
      $region12: #{tpu_custom_call.1} parent=5 // pred_fallthru
        _
      %p263 = scmp.lt.s32.totalorder %s20, 2
      // Predicated region
      $region37: #{tpu_custom_call.1} parent=5 // pred_check
        %p264 = pneg %p263
      $region38: #{tpu_custom_call.1} parent=5 // pred_check_branch
        %266 = sbr.rel (%p264) target = $region40
      $region39: #{tpu_custom_call.1} parent=5 // pred_region
        // Predicated region
        $region41: #{tpu_custom_call.1} parent=39 // pred_check
          %p267 = pneg %p52
        $region42: #{tpu_custom_call.1} parent=39 // pred_check_branch
          %269 = sbr.rel (%p267) target = $region44
        $region43: #{tpu_custom_call.1} parent=39 // pred_region
          %s270 = sand.u32 %s42, 1
          %s271 = scalar_lea.sflag [#allocation6], %s270
          %s272 = sand.u32 %s42, 1
          %s273 = smul.addr %s272, 8
          %s274 = scalar_lea.vmem [#allocation5], %s273
          %s276 = ssub.s32 128, 128
          %277 = vsyncadd %s271, %s276
          %s278 = smul.addr %s27, 128
          %s279 = scalar_lea.hbm %s0, %s278
          %s281 = sshll.u32 %s274, 4
          %s282 = int_to_ptr.vmem [resolvable:$true] %s281
          %284 = dma.hbm_to_vmem [thread:$0]  %s279, 128, %s282, %s271
        $region44: #{tpu_custom_call.1} parent=39 // pred_fallthru
          _
      $region40: #{tpu_custom_call.1} parent=5 // pred_fallthru
        _
      %p285 = scmp.le.s32.totalorder 1, %s20
      %p286 = scmp.lt.s32.totalorder %s20, 3
      %p287 = pnand %p285, %p286
      %p288 = pneg %p287
      // Predicated region
      $region45: #{tpu_custom_call.1} parent=5 // pred_check
        _
      $region46: #{tpu_custom_call.1} parent=5 // pred_check_branch
        %290 = sbr.rel (%p287) target = $region48
      $region47: #{tpu_custom_call.1} parent=5 // pred_region
        %s291 = ssub.s32 %s20, 1
        %s292 = sand.u32 %s45, 1
        %s293 = scalar_lea.sflag [#allocation6], %s292
        %s294 = sand.u32 %s45, 1
        %s295 = smul.addr %s294, 8
        %s296 = scalar_lea.vmem [#allocation5], %s295
        // Predicated region
        $region49: #{tpu_custom_call.1} parent=47 // pred_check
          %p297 = pneg %p58
        $region50: #{tpu_custom_call.1} parent=47 // pred_check_branch
          %299 = sbr.rel (%p297) target = $region52
        $region51: #{tpu_custom_call.1} parent=47 // pred_region
          %300 = dma.done %s293, 128
        $region52: #{tpu_custom_call.1} parent=47 // pred_fallthru
          _
        // Predicated region
        $region53: #{tpu_custom_call.1} parent=47 // pred_check
          %p301 = pneg %p121
        $region54: #{tpu_custom_call.1} parent=47 // pred_check_branch
          %303 = sbr.rel (%p301) target = $region56
        $region55: #{tpu_custom_call.1} parent=47 // pred_region
          %304 = dma.done [#allocation9], 256
        $region56: #{tpu_custom_call.1} parent=47 // pred_fallthru
          _
        // Predicated region
        $region57: #{tpu_custom_call.1} parent=47 // pred_check
          %p305 = pneg %p142
        $region58: #{tpu_custom_call.1} parent=47 // pred_check_branch
          %307 = sbr.rel (%p305) target = $region60
        $region59: #{tpu_custom_call.1} parent=47 // pred_region
          %308 = dma.done [#allocation9], 16
        $region60: #{tpu_custom_call.1} parent=47 // pred_fallthru
          _
        %s309 = sand.u32 %s45, 1
        %s310 = scalar_lea.sflag [#allocation6], %s309
        %s311 = sand.u32 %s45, 1
        %s312 = smul.addr %s311, 8
        %s313 = scalar_lea.vmem [#allocation5], %s312
        %p314 = pneg %p58
        %p315 = pneg %p55
        %p316 = pneg %p79
        %p317 = pneg %p76
        %p318 = pneg %p100
        %p319 = pneg %p97
        %p320 = pneg %p121
        %p321 = pneg %p118
        %p322 = pneg %p142
        %p323 = pneg %p139
        %p324 = pneg %p163
        %p325 = pneg %p160
        %p326 = pneg %p184
        %p327 = pneg %p181
        %p328 = pneg %p212
        %p329 = pneg %p209
        %s330 = sand.u32 %s199, 1
        %s331 = scalar_lea.sflag [#allocation7], %s330
        %s332 = sand.u32 %s199, 1
        %s333 = smul.addr %s332, 8
        %s334 = scalar_lea.vmem [#allocation11], %s333
        %p336 = scmp.eq.s32.totalorder %s30, 0
        // Predicated region
        $region61: #{tpu_custom_call.1} parent=47 // pred_check
          %p337 = pneg %p336
        $region62: #{tpu_custom_call.1} parent=47 // pred_check_branch
          %339 = sbr.rel (%p337) target = $region64
        $region63: #{tpu_custom_call.1} parent=47 // pred_region
          %v340 = vld [vmem:[%s296] sm:$0xff]
          %vm341 = vcmask 261120
          %v342 = vsel %vm341, %v340, 0.0
          %343 = vadd.xlane.f32.xlu0 %v342
          %v344 = vpop.xlane.xlu0 %343
          %v345 = vrcp.pop 32.0
          %v346 = vmul.f32 %v344, %v345
          %v347 = vsub.f32 %v340, %v346
          %v348 = vmul.f32 %v347, %v347
          %v349 = vsel %vm341, %v348, 0.0
          %350 = vadd.xlane.f32.xlu0 %v349
          %v351 = vpop.xlane.xlu0 %350
          %v352 = vmul.f32 %v351, %v345
          %v353 = vadd.f32 %v352, 1e-12
          %v354 = vrsqrt.pop %v353
          %v355 = vmul.f32 %v347, %v354
          %v356 = vld [vmem:[%s1] sm:$0x1]
          %v358 = vlaneseq
          %v359 = vshrl.u32 %v358, 7
          %v360 = vsub.s32 0, %v359
          %v361 = vrot.slane %v356, %v360
          %v363 = vmul.f32 %v355, %v361
          %v364 = vld [vmem:[%s2] sm:$0x1]
          %v366 = vlaneseq
          %v367 = vshrl.u32 %v366, 7
          %v368 = vsub.s32 0, %v367
          %v369 = vrot.slane %v364, %v368
          %v371 = vadd.f32 %v363, %v369
          %v372 = vpack.c.bf16 %v371, %v371
          %v373 = vld [vmem:[#allocation8] sm:$0xf]
          %v374 = vld [vmem:[#allocation8 + $0x4] sm:$0xf]
          %v375 = vld [vmem:[#allocation8 + $0x8] sm:$0xf]
          %v376 = vld [vmem:[#allocation8 + $0xc] sm:$0xf]
          %v377 = vld [vmem:[#allocation10] sm:$0x1]
          %v379 = vlaneseq
          %v380 = vshrl.u32 %v379, 7
          %v381 = vsub.s32 0, %v380
          %v382 = vrot.slane %v377, %v381
          %v388 = vunpack.c.l.b16 %v373
          %v389 = vunpack.c.l.b16 %v374
          %v390 = vunpack.c.l.b16 %v375
          %v391 = vunpack.c.l.b16 %v376
          %v392 = vpack.c.b16 %v389, %v388
          %v393 = vpack.c.b16 %v391, %v390
          %v397 = vsel %vm341, %v372, 0
          %399 = vmatprep.subr.bf16.mxu0 0
          %400 = vmatpush1.bf16.msra.mxu0 %v392
          %401 = vmatprep.subr.bf16.mxu0 0
          %402 = vmatpush1.bf16.msra.mxu0 %v393
          %403 = vmatprep.subr.bf16.mxu0 0
          %404 = vmatpush1.bf16.msra.mxu0 0
          %405 = vmatprep.subr.bf16.mxu0 0
          %406 = vmatpush1.bf16.msra.mxu0 0
          %407 = vmatprep.subr.bf16.mxu0 0
          %408 = vmatpush1.bf16.msra.mxu0 0
          %409 = vmatprep.subr.bf16.mxu0 0
          %410 = vmatpush1.bf16.msra.mxu0 0
          %411 = vmatprep.subr.bf16.mxu0 0
          %412 = vmatpush1.bf16.msra.mxu0 0
          %413 = vmatprep.subr.bf16.mxu0 0
          %414 = vmatpush1.bf16.msra.mxu0 0
          %415 = vmatprep.subr.bf16.mxu0 0
          %416 = vmatpush1.bf16.msra.mxu0 0
          %417 = vmatprep.subr.bf16.mxu0 0
          %418 = vmatpush1.bf16.msra.mxu0 0
          %419 = vmatprep.subr.bf16.mxu0 0
          %420 = vmatpush1.bf16.msra.mxu0 0
          %421 = vmatprep.subr.bf16.mxu0 0
          %422 = vmatpush1.bf16.msra.mxu0 0
          %423 = vmatprep.subr.bf16.mxu0 0
          %424 = vmatpush1.bf16.msra.mxu0 0
          %425 = vmatprep.subr.bf16.mxu0 0
          %426 = vmatpush1.bf16.msra.mxu0 0
          %427 = vmatprep.subr.bf16.mxu0 0
          %428 = vmatpush1.bf16.msra.mxu0 0
          %429 = vmatprep.subr.bf16.mxu0 0
          %430 = vmatpush1.bf16.msra.mxu0 0
          %431 = vmatprep.mubr.bf16.mxu0 0
          %432 = vmatmul.mubr.bf16.gmra.mrb[0].mxu0 %v397
          %v433 = vpop.f32.mrb[0].mxu0
          %v434 = vadd.f32 %v382, %v433
          %v435 = vpop.f32.mrb[0].mxu0
          %v436 = vpop.f32.mrb[0].mxu0
          %v437 = vpop.f32.mrb[0].mxu0
          %438 = vdwg.mxu0
          %v439 = vpack.c.bf16 %v434, %v434
          %vm440 = vcmask 60416
          %441 = vst.msk [vmem:[#allocation2] sm:$0xf] %vm440, %v439
          %443 = vrot.lane.b32.xlu0 %v434, 96
          %v444 = vpop.permute.xlu0 %443
          %446 = vxpose.xlu0.b32.start [1/16] %v444, 128
          %447 = vxpose.xlu0.b32.cont [2/16] 0.0, 128
          %448 = vxpose.xlu0.b32.cont [3/16] 0.0, 128
          %449 = vxpose.xlu0.b32.cont [4/16] 0.0, 128
          %450 = vxpose.xlu0.b32.cont [5/16] 0.0, 128
          %451 = vxpose.xlu0.b32.cont [6/16] 0.0, 128
          %452 = vxpose.xlu0.b32.cont [7/16] 0.0, 128
          %453 = vxpose.xlu0.b32.cont [8/16] 0.0, 128
          %454 = vxpose.xlu0.b32.cont [9/16] 0.0, 128
          %455 = vxpose.xlu0.b32.cont [10/16] 0.0, 128
          %456 = vxpose.xlu0.b32.cont [11/16] 0.0, 128
          %457 = vxpose.xlu0.b32.cont [12/16] 0.0, 128
          %458 = vxpose.xlu0.b32.cont [13/16] 0.0, 128
          %459 = vxpose.xlu0.b32.cont [14/16] 0.0, 128
          %460 = vxpose.xlu0.b32.cont [15/16] 0.0, 128
          %461 = vxpose.xlu0.b32.end [16/16] 0.0, 128
          %v462 = vpop.trf.xlu0
          %v463 = vpop.trf.xlu0
          %v464 = vpop.trf.xlu0
          %v465 = vpop.trf.xlu0
          %v466 = vpop.trf.xlu0
          %v467 = vpop.trf.xlu0
          %v468 = vpop.trf.xlu0
          %v469 = vpop.trf.xlu0
          %v470 = vpop.trf.xlu0
          %v471 = vpop.trf.xlu0
          %v472 = vpop.trf.xlu0
          %v473 = vpop.trf.xlu0
          %v474 = vpop.trf.xlu0
          %v475 = vpop.trf.xlu0
          %v476 = vpop.trf.xlu0
          %v477 = vpop.trf.xlu0
          %v478 = vpack.c.bf16 %v462, %v462
          %479 = vst.msk [vmem:[#allocation3] sm:$0xf] %vm440, %v478
          %v481 = vunpack.c.l.b16 %v439
          %v482 = vpack.c.b16 %v481, %v481
          %483 = vrot.lane.b32.xlu0 %v482, 64
          %v484 = vpop.permute.xlu0 %483
          %486 = vst.msk [vmem:[#allocation4] sm:$0xf] %vm440, %v484
          %487 = vrot.lane.b32.xlu0 %v482, 120
          %v488 = vpop.permute.xlu0 %487
          %s490 = scalar_lea.vmem [#allocation2], 4
          %491 = vst.msk [vmem:[%s490] sm:$0xf] %vm440, %v488
          %492 = vrot.lane.b32.xlu0 %v434, 88
          %v493 = vpop.permute.xlu0 %492
          %495 = vxpose.xlu0.b32.start [1/16] %v493, 128
          %496 = vxpose.xlu0.b32.cont [2/16] 0.0, 128
          %497 = vxpose.xlu0.b32.cont [3/16] 0.0, 128
          %498 = vxpose.xlu0.b32.cont [4/16] 0.0, 128
          %499 = vxpose.xlu0.b32.cont [5/16] 0.0, 128
          %500 = vxpose.xlu0.b32.cont [6/16] 0.0, 128
          %501 = vxpose.xlu0.b32.cont [7/16] 0.0, 128
          %502 = vxpose.xlu0.b32.cont [8/16] 0.0, 128
          %503 = vxpose.xlu0.b32.cont [9/16] 0.0, 128
          %504 = vxpose.xlu0.b32.cont [10/16] 0.0, 128
          %505 = vxpose.xlu0.b32.cont [11/16] 0.0, 128
          %506 = vxpose.xlu0.b32.cont [12/16] 0.0, 128
          %507 = vxpose.xlu0.b32.cont [13/16] 0.0, 128
          %508 = vxpose.xlu0.b32.cont [14/16] 0.0, 128
          %509 = vxpose.xlu0.b32.cont [15/16] 0.0, 128
          %510 = vxpose.xlu0.b32.end [16/16] 0.0, 128
          %v511 = vpop.trf.xlu0
          %v512 = vpop.trf.xlu0
          %v513 = vpop.trf.xlu0
          %v514 = vpop.trf.xlu0
          %v515 = vpop.trf.xlu0
          %v516 = vpop.trf.xlu0
          %v517 = vpop.trf.xlu0
          %v518 = vpop.trf.xlu0
          %v519 = vpop.trf.xlu0
          %v520 = vpop.trf.xlu0
          %v521 = vpop.trf.xlu0
          %v522 = vpop.trf.xlu0
          %v523 = vpop.trf.xlu0
          %v524 = vpop.trf.xlu0
          %v525 = vpop.trf.xlu0
          %v526 = vpop.trf.xlu0
          %v527 = vpack.c.bf16 %v511, %v511
          %s528 = scalar_lea.vmem [#allocation3], 4
          %529 = vst.msk [vmem:[%s528] sm:$0xf] %vm440, %v527
          %530 = vrot.lane.b32.xlu0 %v482, 56
          %v531 = vpop.permute.xlu0 %530
          %s533 = scalar_lea.vmem [#allocation4], 4
          %534 = vst.msk [vmem:[%s533] sm:$0xf] %vm440, %v531
          %535 = vrot.lane.b32.xlu0 %v482, 112
          %v536 = vpop.permute.xlu0 %535
          %s538 = scalar_lea.vmem [#allocation2], 8
          %539 = vst.msk [vmem:[%s538] sm:$0xf] %vm440, %v536
          %540 = vrot.lane.b32.xlu0 %v434, 80
          %v541 = vpop.permute.xlu0 %540
          %543 = vxpose.xlu0.b32.start [1/16] %v541, 128
          %544 = vxpose.xlu0.b32.cont [2/16] 0.0, 128
          %545 = vxpose.xlu0.b32.cont [3/16] 0.0, 128
          %546 = vxpose.xlu0.b32.cont [4/16] 0.0, 128
          %547 = vxpose.xlu0.b32.cont [5/16] 0.0, 128
          %548 = vxpose.xlu0.b32.cont [6/16] 0.0, 128
          %549 = vxpose.xlu0.b32.cont [7/16] 0.0, 128
          %550 = vxpose.xlu0.b32.cont [8/16] 0.0, 128
          %551 = vxpose.xlu0.b32.cont [9/16] 0.0, 128
          %552 = vxpose.xlu0.b32.cont [10/16] 0.0, 128
          %553 = vxpose.xlu0.b32.cont [11/16] 0.0, 128
          %554 = vxpose.xlu0.b32.cont [12/16] 0.0, 128
          %555 = vxpose.xlu0.b32.cont [13/16] 0.0, 128
          %556 = vxpose.xlu0.b32.cont [14/16] 0.0, 128
          %557 = vxpose.xlu0.b32.cont [15/16] 0.0, 128
          %558 = vxpose.xlu0.b32.end [16/16] 0.0, 128
          %v559 = vpop.trf.xlu0
          %v560 = vpop.trf.xlu0
          %v561 = vpop.trf.xlu0
          %v562 = vpop.trf.xlu0
          %v563 = vpop.trf.xlu0
          %v564 = vpop.trf.xlu0
          %v565 = vpop.trf.xlu0
          %v566 = vpop.trf.xlu0
          %v567 = vpop.trf.xlu0
          %v568 = vpop.trf.xlu0
          %v569 = vpop.trf.xlu0
          %v570 = vpop.trf.xlu0
          %v571 = vpop.trf.xlu0
          %v572 = vpop.trf.xlu0
          %v573 = vpop.trf.xlu0
          %v574 = vpop.trf.xlu0
          %v575 = vpack.c.bf16 %v559, %v559
          %s576 = scalar_lea.vmem [#allocation3], 8
          %577 = vst.msk [vmem:[%s576] sm:$0xf] %vm440, %v575
          %578 = vrot.lane.b32.xlu0 %v482, 48
          %v579 = vpop.permute.xlu0 %578
          %s581 = scalar_lea.vmem [#allocation4], 8
          %582 = vst.msk [vmem:[%s581] sm:$0xf] %vm440, %v579
          %583 = vrot.lane.b32.xlu0 %v482, 104
          %v584 = vpop.permute.xlu0 %583
          %s586 = scalar_lea.vmem [#allocation2], 12
          %587 = vst.msk [vmem:[%s586] sm:$0xf] %vm440, %v584
          %588 = vrot.lane.b32.xlu0 %v434, 72
          %v589 = vpop.permute.xlu0 %588
          %591 = vxpose.xlu0.b32.start [1/16] %v589, 128
          %592 = vxpose.xlu0.b32.cont [2/16] 0.0, 128
          %593 = vxpose.xlu0.b32.cont [3/16] 0.0, 128
          %594 = vxpose.xlu0.b32.cont [4/16] 0.0, 128
          %595 = vxpose.xlu0.b32.cont [5/16] 0.0, 128
          %596 = vxpose.xlu0.b32.cont [6/16] 0.0, 128
          %597 = vxpose.xlu0.b32.cont [7/16] 0.0, 128
          %598 = vxpose.xlu0.b32.cont [8/16] 0.0, 128
          %599 = vxpose.xlu0.b32.cont [9/16] 0.0, 128
          %600 = vxpose.xlu0.b32.cont [10/16] 0.0, 128
          %601 = vxpose.xlu0.b32.cont [11/16] 0.0, 128
          %602 = vxpose.xlu0.b32.cont [12/16] 0.0, 128
          %603 = vxpose.xlu0.b32.cont [13/16] 0.0, 128
          %604 = vxpose.xlu0.b32.cont [14/16] 0.0, 128
          %605 = vxpose.xlu0.b32.cont [15/16] 0.0, 128
          %606 = vxpose.xlu0.b32.end [16/16] 0.0, 128
          %v607 = vpop.trf.xlu0
          %v608 = vpop.trf.xlu0
          %v609 = vpop.trf.xlu0
          %v610 = vpop.trf.xlu0
          %v611 = vpop.trf.xlu0
          %v612 = vpop.trf.xlu0
          %v613 = vpop.trf.xlu0
          %v614 = vpop.trf.xlu0
          %v615 = vpop.trf.xlu0
          %v616 = vpop.trf.xlu0
          %v617 = vpop.trf.xlu0
          %v618 = vpop.trf.xlu0
          %v619 = vpop.trf.xlu0
          %v620 = vpop.trf.xlu0
          %v621 = vpop.trf.xlu0
          %v622 = vpop.trf.xlu0
          %v623 = vpack.c.bf16 %v607, %v607
          %s624 = scalar_lea.vmem [#allocation3], 12
          %625 = vst.msk [vmem:[%s624] sm:$0xf] %vm440, %v623
          %626 = vrot.lane.b32.xlu0 %v482, 40
          %v627 = vpop.permute.xlu0 %626
          %s629 = scalar_lea.vmem [#allocation4], 12
          %630 = vst.msk [vmem:[%s629] sm:$0xf] %vm440, %v627
        $region64: #{tpu_custom_call.1} parent=47 // pred_fallthru
          _
        %s631 = smul.u32 %s30, 8
        %s632 = sshra.s32 %s631, 3
        %s633 = sand.u32 %s631, 7
        %s634 = smul.addr %s632, 4
        %s635 = scalar_lea.vmem [#allocation2], %s634
        %v636 = vld [vmem:[%s635] sm:$0xf]
        %v637 = vld [vmem:[%s635 + $0x4] sm:$0xf]
        %v638 = vld [vmem:[%s635 + $0x8] sm:$0xf]
        %v639 = vld [vmem:[%s635 + $0xc] sm:$0xf]
        %v640 = vld [vmem:[#allocation3] sm:$0xf]
        %v641 = vld [vmem:[#allocation3 + $0x4] sm:$0xf]
        %v642 = vld [vmem:[#allocation3 + $0x8] sm:$0xf]
        %v643 = vld [vmem:[#allocation3 + $0xc] sm:$0xf]
        %v644 = vld [vmem:[#allocation4] sm:$0xf]
        %v645 = vld [vmem:[#allocation4 + $0x4] sm:$0xf]
        %v646 = vld [vmem:[#allocation4 + $0x8] sm:$0xf]
        %v647 = vld [vmem:[#allocation4 + $0xc] sm:$0xf]
        %vm648 = vcmask 64512
        %v650 = vsel %vm648, %v636, 0
        %vm652 = vcmask 1043456
        %v654 = vsel %vm652, %v640, 0
        %656 = vmatprep.subr.bf16.mxu0 0
        %657 = vmatpush1.bf16.msra.mxu0 %v654
        %658 = vmatprep.subr.bf16.mxu0 0
        %659 = vmatpush1.bf16.msra.mxu0 0
        %660 = vmatprep.subr.bf16.mxu0 0
        %661 = vmatpush1.bf16.msra.mxu0 0
        %662 = vmatprep.subr.bf16.mxu0 0
        %663 = vmatpush1.bf16.msra.mxu0 0
        %664 = vmatprep.subr.bf16.mxu0 0
        %665 = vmatpush1.bf16.msra.mxu0 0
        %666 = vmatprep.subr.bf16.mxu0 0
        %667 = vmatpush1.bf16.msra.mxu0 0
        %668 = vmatprep.subr.bf16.mxu0 0
        %669 = vmatpush1.bf16.msra.mxu0 0
        %670 = vmatprep.subr.bf16.mxu0 0
        %671 = vmatpush1.bf16.msra.mxu0 0
        %672 = vmatprep.subr.bf16.mxu0 0
        %673 = vmatpush1.bf16.msra.mxu0 0
        %674 = vmatprep.subr.bf16.mxu0 0
        %675 = vmatpush1.bf16.msra.mxu0 0
        %676 = vmatprep.subr.bf16.mxu0 0
        %677 = vmatpush1.bf16.msra.mxu0 0
        %678 = vmatprep.subr.bf16.mxu0 0
        %679 = vmatpush1.bf16.msra.mxu0 0
        %680 = vmatprep.subr.bf16.mxu0 0
        %681 = vmatpush1.bf16.msra.mxu0 0
        %682 = vmatprep.subr.bf16.mxu0 0
        %683 = vmatpush1.bf16.msra.mxu0 0
        %684 = vmatprep.subr.bf16.mxu0 0
        %685 = vmatpush1.bf16.msra.mxu0 0
        %686 = vmatprep.subr.bf16.mxu0 0
        %687 = vmatpush1.bf16.msra.mxu0 0
        %688 = vmatprep.mubr.bf16.mxu0 0
        %689 = vmatmul.mubr.bf16.gmra.mrb[0].mxu0 %v650
        %v690 = vpop.f32.mrb[0].mxu0
        %v691 = vadd.f32 0.0, %v690
        %v692 = vpop.f32.mrb[0].mxu0
        %v693 = vpop.f32.mrb[0].mxu0
        %v694 = vpop.f32.mrb[0].mxu0
        %695 = vdwg.mxu0
        %v697 = vsel %vm648, %v637, 0
        %v700 = vsel %vm652, %v641, 0
        %702 = vmatprep.subr.bf16.mxu0 0
        %703 = vmatpush1.bf16.msra.mxu0 %v700
        %704 = vmatprep.subr.bf16.mxu0 0
        %705 = vmatpush1.bf16.msra.mxu0 0
        %706 = vmatprep.subr.bf16.mxu0 0
        %707 = vmatpush1.bf16.msra.mxu0 0
        %708 = vmatprep.subr.bf16.mxu0 0
        %709 = vmatpush1.bf16.msra.mxu0 0
        %710 = vmatprep.subr.bf16.mxu0 0
        %711 = vmatpush1.bf16.msra.mxu0 0
        %712 = vmatprep.subr.bf16.mxu0 0
        %713 = vmatpush1.bf16.msra.mxu0 0
        %714 = vmatprep.subr.bf16.mxu0 0
        %715 = vmatpush1.bf16.msra.mxu0 0
        %716 = vmatprep.subr.bf16.mxu0 0
        %717 = vmatpush1.bf16.msra.mxu0 0
        %718 = vmatprep.subr.bf16.mxu0 0
        %719 = vmatpush1.bf16.msra.mxu0 0
        %720 = vmatprep.subr.bf16.mxu0 0
        %721 = vmatpush1.bf16.msra.mxu0 0
        %722 = vmatprep.subr.bf16.mxu0 0
        %723 = vmatpush1.bf16.msra.mxu0 0
        %724 = vmatprep.subr.bf16.mxu0 0
        %725 = vmatpush1.bf16.msra.mxu0 0
        %726 = vmatprep.subr.bf16.mxu0 0
        %727 = vmatpush1.bf16.msra.mxu0 0
        %728 = vmatprep.subr.bf16.mxu0 0
        %729 = vmatpush1.bf16.msra.mxu0 0
        %730 = vmatprep.subr.bf16.mxu0 0
        %731 = vmatpush1.bf16.msra.mxu0 0
        %732 = vmatprep.subr.bf16.mxu0 0
        %733 = vmatpush1.bf16.msra.mxu0 0
        %734 = vmatprep.mubr.bf16.mxu0 0
        %735 = vmatmul.mubr.bf16.gmra.mrb[0].mxu0 %v697
        %v736 = vpop.f32.mrb[0].mxu0
        %v737 = vadd.f32 0.0, %v736
        %v738 = vpop.f32.mrb[0].mxu0
        %v739 = vpop.f32.mrb[0].mxu0
        %v740 = vpop.f32.mrb[0].mxu0
        %741 = vdwg.mxu0
        %v743 = vsel %vm648, %v638, 0
        %v746 = vsel %vm652, %v642, 0
        %748 = vmatprep.subr.bf16.mxu0 0
        %749 = vmatpush1.bf16.msra.mxu0 %v746
        %750 = vmatprep.subr.bf16.mxu0 0
        %751 = vmatpush1.bf16.msra.mxu0 0
        %752 = vmatprep.subr.bf16.mxu0 0
        %753 = vmatpush1.bf16.msra.mxu0 0
        %754 = vmatprep.subr.bf16.mxu0 0
        %755 = vmatpush1.bf16.msra.mxu0 0
        %756 = vmatprep.subr.bf16.mxu0 0
        %757 = vmatpush1.bf16.msra.mxu0 0
        %758 = vmatprep.subr.bf16.mxu0 0
        %759 = vmatpush1.bf16.msra.mxu0 0
        %760 = vmatprep.subr.bf16.mxu0 0
        %761 = vmatpush1.bf16.msra.mxu0 0
        %762 = vmatprep.subr.bf16.mxu0 0
        %763 = vmatpush1.bf16.msra.mxu0 0
        %764 = vmatprep.subr.bf16.mxu0 0
        %765 = vmatpush1.bf16.msra.mxu0 0
        %766 = vmatprep.subr.bf16.mxu0 0
        %767 = vmatpush1.bf16.msra.mxu0 0
        %768 = vmatprep.subr.bf16.mxu0 0
        %769 = vmatpush1.bf16.msra.mxu0 0
        %770 = vmatprep.subr.bf16.mxu0 0
        %771 = vmatpush1.bf16.msra.mxu0 0
        %772 = vmatprep.subr.bf16.mxu0 0
        %773 = vmatpush1.bf16.msra.mxu0 0
        %774 = vmatprep.subr.bf16.mxu0 0
        %775 = vmatpush1.bf16.msra.mxu0 0
        %776 = vmatprep.subr.bf16.mxu0 0
        %777 = vmatpush1.bf16.msra.mxu0 0
        %778 = vmatprep.subr.bf16.mxu0 0
        %779 = vmatpush1.bf16.msra.mxu0 0
        %780 = vmatprep.mubr.bf16.mxu0 0
        %781 = vmatmul.mubr.bf16.gmra.mrb[0].mxu0 %v743
        %v782 = vpop.f32.mrb[0].mxu0
        %v783 = vadd.f32 0.0, %v782
        %v784 = vpop.f32.mrb[0].mxu0
        %v785 = vpop.f32.mrb[0].mxu0
        %v786 = vpop.f32.mrb[0].mxu0
        %787 = vdwg.mxu0
        %v789 = vsel %vm648, %v639, 0
        %v792 = vsel %vm652, %v643, 0
        %794 = vmatprep.subr.bf16.mxu0 0
        %795 = vmatpush1.bf16.msra.mxu0 %v792
        %796 = vmatprep.subr.bf16.mxu0 0
        %797 = vmatpush1.bf16.msra.mxu0 0
        %798 = vmatprep.subr.bf16.mxu0 0
        %799 = vmatpush1.bf16.msra.mxu0 0
        %800 = vmatprep.subr.bf16.mxu0 0
        %801 = vmatpush1.bf16.msra.mxu0 0
        %802 = vmatprep.subr.bf16.mxu0 0
        %803 = vmatpush1.bf16.msra.mxu0 0
        %804 = vmatprep.subr.bf16.mxu0 0
        %805 = vmatpush1.bf16.msra.mxu0 0
        %806 = vmatprep.subr.bf16.mxu0 0
        %807 = vmatpush1.bf16.msra.mxu0 0
        %808 = vmatprep.subr.bf16.mxu0 0
        %809 = vmatpush1.bf16.msra.mxu0 0
        %810 = vmatprep.subr.bf16.mxu0 0
        %811 = vmatpush1.bf16.msra.mxu0 0
        %812 = vmatprep.subr.bf16.mxu0 0
        %813 = vmatpush1.bf16.msra.mxu0 0
        %814 = vmatprep.subr.bf16.mxu0 0
        %815 = vmatpush1.bf16.msra.mxu0 0
        %816 = vmatprep.subr.bf16.mxu0 0
        %817 = vmatpush1.bf16.msra.mxu0 0
        %818 = vmatprep.subr.bf16.mxu0 0
        %819 = vmatpush1.bf16.msra.mxu0 0
        %820 = vmatprep.subr.bf16.mxu0 0
        %821 = vmatpush1.bf16.msra.mxu0 0
        %822 = vmatprep.subr.bf16.mxu0 0
        %823 = vmatpush1.bf16.msra.mxu0 0
        %824 = vmatprep.subr.bf16.mxu0 0
        %825 = vmatpush1.bf16.msra.mxu0 0
        %826 = vmatprep.mubr.bf16.mxu0 0
        %827 = vmatmul.mubr.bf16.gmra.mrb[0].mxu0 %v789
        %v828 = vpop.f32.mrb[0].mxu0
        %v829 = vadd.f32 0.0, %v828
        %v830 = vpop.f32.mrb[0].mxu0
        %v831 = vpop.f32.mrb[0].mxu0
        %v832 = vpop.f32.mrb[0].mxu0
        %833 = vdwg.mxu0
        %v834 = vsel %vm648, %v691, -inf
        %835 = vmax.xlane.f32.xlu0 %v834
        %v836 = vpop.xlane.xlu0 %835
        %v837 = vsel %vm648, %v737, -inf
        %838 = vmax.xlane.f32.xlu0 %v837
        %v839 = vpop.xlane.xlu0 %838
        %v840 = vsel %vm648, %v783, -inf
        %841 = vmax.xlane.f32.xlu0 %v840
        %v842 = vpop.xlane.xlu0 %841
        %v843 = vsel %vm648, %v829, -inf
        %844 = vmax.xlane.f32.xlu0 %v843
        %v845 = vpop.xlane.xlu0 %844
        %v846 = vsub.f32 %v691, %v836
        %v847 = vsub.f32 %v737, %v839
        %v848 = vsub.f32 %v783, %v842
        %v849 = vsub.f32 %v829, %v845
        %v850 = vmul.f32 %v846, 1.442695
        %v851 = vpow.pop %v850
        %v852 = vmul.f32 %v847, 1.442695
        %v853 = vpow.pop %v852
        %v854 = vmul.f32 %v848, 1.442695
        %v855 = vpow.pop %v854
        %v856 = vmul.f32 %v849, 1.442695
        %v857 = vpow.pop %v856
        %v858 = vsel %vm648, %v851, 0.0
        %859 = vadd.xlane.f32.xlu0 %v858
        %v860 = vpop.xlane.xlu0 %859
        %v861 = vsel %vm648, %v853, 0.0
        %862 = vadd.xlane.f32.xlu0 %v861
        %v863 = vpop.xlane.xlu0 %862
        %v864 = vsel %vm648, %v855, 0.0
        %865 = vadd.xlane.f32.xlu0 %v864
        %v866 = vpop.xlane.xlu0 %865
        %v867 = vsel %vm648, %v857, 0.0
        %868 = vadd.xlane.f32.xlu0 %v867
        %v869 = vpop.xlane.xlu0 %868
        %v870 = vrcp.pop %v860
        %v871 = vrcp.pop %v863
        %v872 = vrcp.pop %v866
        %v873 = vrcp.pop %v869
        %v874 = vmul.f32 %v851, %v870
        %v875 = vmul.f32 %v853, %v871
        %v876 = vmul.f32 %v855, %v872
        %v877 = vmul.f32 %v857, %v873
        %v878 = vpack.c.bf16 %v874, %v874
        %v879 = vpack.c.bf16 %v875, %v875
        %v880 = vpack.c.bf16 %v876, %v876
        %v881 = vpack.c.bf16 %v877, %v877
        %v883 = vsel %vm648, %v878, 0
        %v886 = vsel %vm652, %v644, 0
        %888 = vmatprep.subr.bf16.mxu0 0
        %889 = vmatpush1.bf16.msra.mxu0 %v886
        %890 = vmatprep.subr.bf16.mxu0 0
        %891 = vmatpush1.bf16.msra.mxu0 0
        %892 = vmatprep.subr.bf16.mxu0 0
        %893 = vmatpush1.bf16.msra.mxu0 0
        %894 = vmatprep.subr.bf16.mxu0 0
        %895 = vmatpush1.bf16.msra.mxu0 0
        %896 = vmatprep.subr.bf16.mxu0 0
        %897 = vmatpush1.bf16.msra.mxu0 0
        %898 = vmatprep.subr.bf16.mxu0 0
        %899 = vmatpush1.bf16.msra.mxu0 0
        %900 = vmatprep.subr.bf16.mxu0 0
        %901 = vmatpush1.bf16.msra.mxu0 0
        %902 = vmatprep.subr.bf16.mxu0 0
        %903 = vmatpush1.bf16.msra.mxu0 0
        %904 = vmatprep.subr.bf16.mxu0 0
        %905 = vmatpush1.bf16.msra.mxu0 0
        %906 = vmatprep.subr.bf16.mxu0 0
        %907 = vmatpush1.bf16.msra.mxu0 0
        %908 = vmatprep.subr.bf16.mxu0 0
        %909 = vmatpush1.bf16.msra.mxu0 0
        %910 = vmatprep.subr.bf16.mxu0 0
        %911 = vmatpush1.bf16.msra.mxu0 0
        %912 = vmatprep.subr.bf16.mxu0 0
        %913 = vmatpush1.bf16.msra.mxu0 0
        %914 = vmatprep.subr.bf16.mxu0 0
        %915 = vmatpush1.bf16.msra.mxu0 0
        %916 = vmatprep.subr.bf16.mxu0 0
        %917 = vmatpush1.bf16.msra.mxu0 0
        %918 = vmatprep.subr.bf16.mxu0 0
        %919 = vmatpush1.bf16.msra.mxu0 0
        %920 = vmatprep.mubr.bf16.mxu0 0
        %921 = vmatmul.mubr.bf16.gmra.mrb[0].mxu0 %v883
        %v922 = vpop.f32.mrb[0].mxu0
        %v923 = vadd.f32 0.0, %v922
        %v924 = vpop.f32.mrb[0].mxu0
        %v925 = vpop.f32.mrb[0].mxu0
        %v926 = vpop.f32.mrb[0].mxu0
        %927 = vdwg.mxu0
        %v929 = vsel %vm648, %v879, 0
        %v932 = vsel %vm652, %v645, 0
        %934 = vmatprep.subr.bf16.mxu0 0
        %935 = vmatpush1.bf16.msra.mxu0 %v932
        %936 = vmatprep.subr.bf16.mxu0 0
        %937 = vmatpush1.bf16.msra.mxu0 0
        %938 = vmatprep.subr.bf16.mxu0 0
        %939 = vmatpush1.bf16.msra.mxu0 0
        %940 = vmatprep.subr.bf16.mxu0 0
        %941 = vmatpush1.bf16.msra.mxu0 0
        %942 = vmatprep.subr.bf16.mxu0 0
        %943 = vmatpush1.bf16.msra.mxu0 0
        %944 = vmatprep.subr.bf16.mxu0 0
        %945 = vmatpush1.bf16.msra.mxu0 0
        %946 = vmatprep.subr.bf16.mxu0 0
        %947 = vmatpush1.bf16.msra.mxu0 0
        %948 = vmatprep.subr.bf16.mxu0 0
        %949 = vmatpush1.bf16.msra.mxu0 0
        %950 = vmatprep.subr.bf16.mxu0 0
        %951 = vmatpush1.bf16.msra.mxu0 0
        %952 = vmatprep.subr.bf16.mxu0 0
        %953 = vmatpush1.bf16.msra.mxu0 0
        %954 = vmatprep.subr.bf16.mxu0 0
        %955 = vmatpush1.bf16.msra.mxu0 0
        %956 = vmatprep.subr.bf16.mxu0 0
        %957 = vmatpush1.bf16.msra.mxu0 0
        %958 = vmatprep.subr.bf16.mxu0 0
        %959 = vmatpush1.bf16.msra.mxu0 0
        %960 = vmatprep.subr.bf16.mxu0 0
        %961 = vmatpush1.bf16.msra.mxu0 0
        %962 = vmatprep.subr.bf16.mxu0 0
        %963 = vmatpush1.bf16.msra.mxu0 0
        %964 = vmatprep.subr.bf16.mxu0 0
        %965 = vmatpush1.bf16.msra.mxu0 0
        %966 = vmatprep.mubr.bf16.mxu0 0
        %967 = vmatmul.mubr.bf16.gmra.mrb[0].mxu0 %v929
        %v968 = vpop.f32.mrb[0].mxu0
        %v969 = vadd.f32 0.0, %v968
        %v970 = vpop.f32.mrb[0].mxu0
        %v971 = vpop.f32.mrb[0].mxu0
        %v972 = vpop.f32.mrb[0].mxu0
        %973 = vdwg.mxu0
        %v975 = vsel %vm648, %v880, 0
        %v978 = vsel %vm652, %v646, 0
        %980 = vmatprep.subr.bf16.mxu0 0
        %981 = vmatpush1.bf16.msra.mxu0 %v978
        %982 = vmatprep.subr.bf16.mxu0 0
        %983 = vmatpush1.bf16.msra.mxu0 0
        %984 = vmatprep.subr.bf16.mxu0 0
        %985 = vmatpush1.bf16.msra.mxu0 0
        %986 = vmatprep.subr.bf16.mxu0 0
        %987 = vmatpush1.bf16.msra.mxu0 0
        %988 = vmatprep.subr.bf16.mxu0 0
        %989 = vmatpush1.bf16.msra.mxu0 0
        %990 = vmatprep.subr.bf16.mxu0 0
        %991 = vmatpush1.bf16.msra.mxu0 0
        %992 = vmatprep.subr.bf16.mxu0 0
        %993 = vmatpush1.bf16.msra.mxu0 0
        %994 = vmatprep.subr.bf16.mxu0 0
        %995 = vmatpush1.bf16.msra.mxu0 0
        %996 = vmatprep.subr.bf16.mxu0 0
        %997 = vmatpush1.bf16.msra.mxu0 0
        %998 = vmatprep.subr.bf16.mxu0 0
        %999 = vmatpush1.bf16.msra.mxu0 0
        %1000 = vmatprep.subr.bf16.mxu0 0
        %1001 = vmatpush1.bf16.msra.mxu0 0
        %1002 = vmatprep.subr.bf16.mxu0 0
        %1003 = vmatpush1.bf16.msra.mxu0 0
        %1004 = vmatprep.subr.bf16.mxu0 0
        %1005 = vmatpush1.bf16.msra.mxu0 0
        %1006 = vmatprep.subr.bf16.mxu0 0
        %1007 = vmatpush1.bf16.msra.mxu0 0
        %1008 = vmatprep.subr.bf16.mxu0 0
        %1009 = vmatpush1.bf16.msra.mxu0 0
        %1010 = vmatprep.subr.bf16.mxu0 0
        %1011 = vmatpush1.bf16.msra.mxu0 0
        %1012 = vmatprep.mubr.bf16.mxu0 0
        %1013 = vmatmul.mubr.bf16.gmra.mrb[0].mxu0 %v975
        %v1014 = vpop.f32.mrb[0].mxu0
        %v1015 = vadd.f32 0.0, %v1014
        %v1016 = vpop.f32.mrb[0].mxu0
        %v1017 = vpop.f32.mrb[0].mxu0
        %v1018 = vpop.f32.mrb[0].mxu0
        %1019 = vdwg.mxu0
        %v1021 = vsel %vm648, %v881, 0
        %v1024 = vsel %vm652, %v647, 0
        %1026 = vmatprep.subr.bf16.mxu0 0
        %1027 = vmatpush1.bf16.msra.mxu0 %v1024
        %1028 = vmatprep.subr.bf16.mxu0 0
        %1029 = vmatpush1.bf16.msra.mxu0 0
        %1030 = vmatprep.subr.bf16.mxu0 0
        %1031 = vmatpush1.bf16.msra.mxu0 0
        %1032 = vmatprep.subr.bf16.mxu0 0
        %1033 = vmatpush1.bf16.msra.mxu0 0
        %1034 = vmatprep.subr.bf16.mxu0 0
        %1035 = vmatpush1.bf16.msra.mxu0 0
        %1036 = vmatprep.subr.bf16.mxu0 0
        %1037 = vmatpush1.bf16.msra.mxu0 0
        %1038 = vmatprep.subr.bf16.mxu0 0
        %1039 = vmatpush1.bf16.msra.mxu0 0
        %1040 = vmatprep.subr.bf16.mxu0 0
        %1041 = vmatpush1.bf16.msra.mxu0 0
        %1042 = vmatprep.subr.bf16.mxu0 0
        %1043 = vmatpush1.bf16.msra.mxu0 0
        %1044 = vmatprep.subr.bf16.mxu0 0
        %1045 = vmatpush1.bf16.msra.mxu0 0
        %1046 = vmatprep.subr.bf16.mxu0 0
        %1047 = vmatpush1.bf16.msra.mxu0 0
        %1048 = vmatprep.subr.bf16.mxu0 0
        %1049 = vmatpush1.bf16.msra.mxu0 0
        %1050 = vmatprep.subr.bf16.mxu0 0
        %1051 = vmatpush1.bf16.msra.mxu0 0
        %1052 = vmatprep.subr.bf16.mxu0 0
        %1053 = vmatpush1.bf16.msra.mxu0 0
        %1054 = vmatprep.subr.bf16.mxu0 0
        %1055 = vmatpush1.bf16.msra.mxu0 0
        %1056 = vmatprep.subr.bf16.mxu0 0
        %1057 = vmatpush1.bf16.msra.mxu0 0
        %1058 = vmatprep.mubr.bf16.mxu0 0
        %1059 = vmatmul.mubr.bf16.gmra.mrb[0].mxu0 %v1021
        %v1060 = vpop.f32.mrb[0].mxu0
        %v1061 = vadd.f32 0.0, %v1060
        %v1062 = vpop.f32.mrb[0].mxu0
        %v1063 = vpop.f32.mrb[0].mxu0
        %v1064 = vpop.f32.mrb[0].mxu0
        %1065 = vdwg.mxu0
        %v1066 = vpack.c.bf16 %v923, %v923
        %v1067 = vpack.c.bf16 %v969, %v969
        %v1068 = vpack.c.bf16 %v1015, %v1015
        %v1069 = vpack.c.bf16 %v1061, %v1061
        %v1070 = vld [vmem:[%s5] sm:$0xf]
        %v1071 = vld [vmem:[%s5 + $0x4] sm:$0xf]
        %v1072 = vld [vmem:[%s5 + $0x8] sm:$0xf]
        %v1073 = vld [vmem:[%s5 + $0xc] sm:$0xf]
        %v1075 = vsel %vm648, %v1066, 0
        %v1078 = vsel %vm652, %v1070, 0
        %1080 = vmatprep.subr.bf16.mxu0 0
        %1081 = vmatpush1.bf16.msra.mxu0 %v1078
        %1082 = vmatprep.subr.bf16.mxu0 0
        %1083 = vmatpush1.bf16.msra.mxu0 0
        %1084 = vmatprep.subr.bf16.mxu0 0
        %1085 = vmatpush1.bf16.msra.mxu0 0
        %1086 = vmatprep.subr.bf16.mxu0 0
        %1087 = vmatpush1.bf16.msra.mxu0 0
        %1088 = vmatprep.subr.bf16.mxu0 0
        %1089 = vmatpush1.bf16.msra.mxu0 0
        %1090 = vmatprep.subr.bf16.mxu0 0
        %1091 = vmatpush1.bf16.msra.mxu0 0
        %1092 = vmatprep.subr.bf16.mxu0 0
        %1093 = vmatpush1.bf16.msra.mxu0 0
        %1094 = vmatprep.subr.bf16.mxu0 0
        %1095 = vmatpush1.bf16.msra.mxu0 0
        %1096 = vmatprep.subr.bf16.mxu0 0
        %1097 = vmatpush1.bf16.msra.mxu0 0
        %1098 = vmatprep.subr.bf16.mxu0 0
        %1099 = vmatpush1.bf16.msra.mxu0 0
        %1100 = vmatprep.subr.bf16.mxu0 0
        %1101 = vmatpush1.bf16.msra.mxu0 0
        %1102 = vmatprep.subr.bf16.mxu0 0
        %1103 = vmatpush1.bf16.msra.mxu0 0
        %1104 = vmatprep.subr.bf16.mxu0 0
        %1105 = vmatpush1.bf16.msra.mxu0 0
        %1106 = vmatprep.subr.bf16.mxu0 0
        %1107 = vmatpush1.bf16.msra.mxu0 0
        %1108 = vmatprep.subr.bf16.mxu0 0
        %1109 = vmatpush1.bf16.msra.mxu0 0
        %1110 = vmatprep.subr.bf16.mxu0 0
        %1111 = vmatpush1.bf16.msra.mxu0 0
        %1112 = vmatprep.mubr.bf16.mxu0 0
        %1113 = vmatmul.mubr.bf16.gmra.mrb[0].mxu0 %v1075
        %v1114 = vpop.f32.mrb[0].mxu0
        %v1115 = vadd.f32 0.0, %v1114
        %v1116 = vpop.f32.mrb[0].mxu0
        %v1117 = vpop.f32.mrb[0].mxu0
        %v1118 = vpop.f32.mrb[0].mxu0
        %1119 = vdwg.mxu0
        %v1121 = vsel %vm648, %v1067, 0
        %v1124 = vsel %vm652, %v1071, 0
        %1126 = vmatprep.subr.bf16.mxu0 0
        %1127 = vmatpush1.bf16.msra.mxu0 %v1124
        %1128 = vmatprep.subr.bf16.mxu0 0
        %1129 = vmatpush1.bf16.msra.mxu0 0
        %1130 = vmatprep.subr.bf16.mxu0 0
        %1131 = vmatpush1.bf16.msra.mxu0 0
        %1132 = vmatprep.subr.bf16.mxu0 0
        %1133 = vmatpush1.bf16.msra.mxu0 0
        %1134 = vmatprep.subr.bf16.mxu0 0
        %1135 = vmatpush1.bf16.msra.mxu0 0
        %1136 = vmatprep.subr.bf16.mxu0 0
        %1137 = vmatpush1.bf16.msra.mxu0 0
        %1138 = vmatprep.subr.bf16.mxu0 0
        %1139 = vmatpush1.bf16.msra.mxu0 0
        %1140 = vmatprep.subr.bf16.mxu0 0
        %1141 = vmatpush1.bf16.msra.mxu0 0
        %1142 = vmatprep.subr.bf16.mxu0 0
        %1143 = vmatpush1.bf16.msra.mxu0 0
        %1144 = vmatprep.subr.bf16.mxu0 0
        %1145 = vmatpush1.bf16.msra.mxu0 0
        %1146 = vmatprep.subr.bf16.mxu0 0
        %1147 = vmatpush1.bf16.msra.mxu0 0
        %1148 = vmatprep.subr.bf16.mxu0 0
        %1149 = vmatpush1.bf16.msra.mxu0 0
        %1150 = vmatprep.subr.bf16.mxu0 0
        %1151 = vmatpush1.bf16.msra.mxu0 0
        %1152 = vmatprep.subr.bf16.mxu0 0
        %1153 = vmatpush1.bf16.msra.mxu0 0
        %1154 = vmatprep.subr.bf16.mxu0 0
        %1155 = vmatpush1.bf16.msra.mxu0 0
        %1156 = vmatprep.subr.bf16.mxu0 0
        %1157 = vmatpush1.bf16.msra.mxu0 0
        %1158 = vmatprep.mubr.bf16.mxu0 0
        %1159 = vmatmul.mubr.bf16.gmra.mrb[0].mxu0 %v1121
        %v1160 = vpop.f32.mrb[0].mxu0
        %v1161 = vadd.f32 0.0, %v1160
        %v1162 = vpop.f32.mrb[0].mxu0
        %v1163 = vpop.f32.mrb[0].mxu0
        %v1164 = vpop.f32.mrb[0].mxu0
        %1165 = vdwg.mxu0
        %v1167 = vsel %vm648, %v1068, 0
        %v1170 = vsel %vm652, %v1072, 0
        %1172 = vmatprep.subr.bf16.mxu0 0
        %1173 = vmatpush1.bf16.msra.mxu0 %v1170
        %1174 = vmatprep.subr.bf16.mxu0 0
        %1175 = vmatpush1.bf16.msra.mxu0 0
        %1176 = vmatprep.subr.bf16.mxu0 0
        %1177 = vmatpush1.bf16.msra.mxu0 0
        %1178 = vmatprep.subr.bf16.mxu0 0
        %1179 = vmatpush1.bf16.msra.mxu0 0
        %1180 = vmatprep.subr.bf16.mxu0 0
        %1181 = vmatpush1.bf16.msra.mxu0 0
        %1182 = vmatprep.subr.bf16.mxu0 0
        %1183 = vmatpush1.bf16.msra.mxu0 0
        %1184 = vmatprep.subr.bf16.mxu0 0
        %1185 = vmatpush1.bf16.msra.mxu0 0
        %1186 = vmatprep.subr.bf16.mxu0 0
        %1187 = vmatpush1.bf16.msra.mxu0 0
        %1188 = vmatprep.subr.bf16.mxu0 0
        %1189 = vmatpush1.bf16.msra.mxu0 0
        %1190 = vmatprep.subr.bf16.mxu0 0
        %1191 = vmatpush1.bf16.msra.mxu0 0
        %1192 = vmatprep.subr.bf16.mxu0 0
        %1193 = vmatpush1.bf16.msra.mxu0 0
        %1194 = vmatprep.subr.bf16.mxu0 0
        %1195 = vmatpush1.bf16.msra.mxu0 0
        %1196 = vmatprep.subr.bf16.mxu0 0
        %1197 = vmatpush1.bf16.msra.mxu0 0
        %1198 = vmatprep.subr.bf16.mxu0 0
        %1199 = vmatpush1.bf16.msra.mxu0 0
        %1200 = vmatprep.subr.bf16.mxu0 0
        %1201 = vmatpush1.bf16.msra.mxu0 0
        %1202 = vmatprep.subr.bf16.mxu0 0
        %1203 = vmatpush1.bf16.msra.mxu0 0
        %1204 = vmatprep.mubr.bf16.mxu0 0
        %1205 = vmatmul.mubr.bf16.gmra.mrb[0].mxu0 %v1167
        %v1206 = vpop.f32.mrb[0].mxu0
        %v1207 = vadd.f32 0.0, %v1206
        %v1208 = vpop.f32.mrb[0].mxu0
        %v1209 = vpop.f32.mrb[0].mxu0
        %v1210 = vpop.f32.mrb[0].mxu0
        %1211 = vdwg.mxu0
        %v1213 = vsel %vm648, %v1069, 0
        %v1216 = vsel %vm652, %v1073, 0
        %1218 = vmatprep.subr.bf16.mxu0 0
        %1219 = vmatpush1.bf16.msra.mxu0 %v1216
        %1220 = vmatprep.subr.bf16.mxu0 0
        %1221 = vmatpush1.bf16.msra.mxu0 0
        %1222 = vmatprep.subr.bf16.mxu0 0
        %1223 = vmatpush1.bf16.msra.mxu0 0
        %1224 = vmatprep.subr.bf16.mxu0 0
        %1225 = vmatpush1.bf16.msra.mxu0 0
        %1226 = vmatprep.subr.bf16.mxu0 0
        %1227 = vmatpush1.bf16.msra.mxu0 0
        %1228 = vmatprep.subr.bf16.mxu0 0
        %1229 = vmatpush1.bf16.msra.mxu0 0
        %1230 = vmatprep.subr.bf16.mxu0 0
        %1231 = vmatpush1.bf16.msra.mxu0 0
        %1232 = vmatprep.subr.bf16.mxu0 0
        %1233 = vmatpush1.bf16.msra.mxu0 0
        %1234 = vmatprep.subr.bf16.mxu0 0
        %1235 = vmatpush1.bf16.msra.mxu0 0
        %1236 = vmatprep.subr.bf16.mxu0 0
        %1237 = vmatpush1.bf16.msra.mxu0 0
        %1238 = vmatprep.subr.bf16.mxu0 0
        %1239 = vmatpush1.bf16.msra.mxu0 0
        %1240 = vmatprep.subr.bf16.mxu0 0
        %1241 = vmatpush1.bf16.msra.mxu0 0
        %1242 = vmatprep.subr.bf16.mxu0 0
        %1243 = vmatpush1.bf16.msra.mxu0 0
        %1244 = vmatprep.subr.bf16.mxu0 0
        %1245 = vmatpush1.bf16.msra.mxu0 0
        %1246 = vmatprep.subr.bf16.mxu0 0
        %1247 = vmatpush1.bf16.msra.mxu0 0
        %1248 = vmatprep.subr.bf16.mxu0 0
        %1249 = vmatpush1.bf16.msra.mxu0 0
        %1250 = vmatprep.mubr.bf16.mxu0 0
        %1251 = vmatmul.mubr.bf16.gmra.mrb[0].mxu0 %v1213
        %v1252 = vpop.f32.mrb[0].mxu0
        %v1253 = vadd.f32 0.0, %v1252
        %v1254 = vpop.f32.mrb[0].mxu0
        %v1255 = vpop.f32.mrb[0].mxu0
        %v1256 = vpop.f32.mrb[0].mxu0
        %1257 = vdwg.mxu0
        %vm1258 = vcmask 261120
        %v1259 = vsel %vm1258, %v1115, 0.0
        %v1260 = vsel %vm1258, %v1161, 0.0
        %v1261 = vadd.f32 %v1259, %v1260
        %v1262 = vsel %vm1258, %v1207, 0.0
        %v1263 = vadd.f32 %v1261, %v1262
        %v1264 = vsel %vm1258, %v1253, 0.0
        %v1265 = vadd.f32 %v1263, %v1264
        %v1266 = vld [vmem:[%s6] sm:$0x1]
        %v1268 = vlaneseq
        %v1269 = vshrl.u32 %v1268, 7
        %v1270 = vsub.s32 0, %v1269
        %v1271 = vrot.slane %v1266, %v1270
        %v1273 = vadd.f32 %v1265, %v1271
        %s1274 = scalar_lea.vmem %s296, %s631 [#allocation5]
        %v1275 = vld [vmem:[%s1274] sm:$0xff]
        %v1276 = vadd.f32 %v1273, %v1275
        %1277 = vst.msk [vmem:[%s334] sm:$0xff] %vm1258, %v1276
        %s1278 = sand.u32 %s199, 1
        %s1279 = scalar_lea.sflag [#allocation7], %s1278
        %s1280 = sand.u32 %s199, 1
        %s1281 = smul.addr %s1280, 8
        %s1282 = scalar_lea.vmem [#allocation11], %s1281
        // Predicated region
        $region65: #{tpu_custom_call.1} parent=47 // pred_check
          %p1283 = pneg %p209
        $region66: #{tpu_custom_call.1} parent=47 // pred_check_branch
          %1285 = sbr.rel (%p1283) target = $region68
        $region67: #{tpu_custom_call.1} parent=47 // pred_region
          %s1287 = ssub.s32 128, 128
          %1288 = vsyncadd %s1279, %s1287
          %s1289 = sadd.s32 %s30, %s29
          %s1290 = smul.addr %s1289, 128
          %s1291 = scalar_lea.hbm %s7, %s1290
          %s1293 = sshll.u32 %s1282, 4
          %s1294 = int_to_ptr.vmem [resolvable:$true] %s1293
          %1296 = dma.vmem_to_hbm [thread:$0]  %s1294, 128, %s1291, %s1279
        $region68: #{tpu_custom_call.1} parent=47 // pred_fallthru
          _
      $region48: #{tpu_custom_call.1} parent=5 // pred_fallthru
        _
      %p1297 = scmp.le.s32.totalorder 2, %s20
      // Predicated region
      $region69: #{tpu_custom_call.1} parent=5 // pred_check
        %p1298 = pneg %p1297
      $region70: #{tpu_custom_call.1} parent=5 // pred_check_branch
        %1300 = sbr.rel (%p1298) target = $region72
      $region71: #{tpu_custom_call.1} parent=5 // pred_region
        %s1301 = ssub.s32 %s20, 2
        // Predicated region
        $region73: #{tpu_custom_call.1} parent=71 // pred_check
          %p1302 = pneg %p215
        $region74: #{tpu_custom_call.1} parent=71 // pred_check_branch
          %1304 = sbr.rel (%p1302) target = $region76
        $region75: #{tpu_custom_call.1} parent=71 // pred_region
          %s1305 = sand.u32 %s200, 1
          %s1306 = scalar_lea.sflag [#allocation7], %s1305
          %s1307 = sand.u32 %s200, 1
          %s1308 = smul.addr %s1307, 8
          %s1309 = scalar_lea.vmem [#allocation11], %s1308
          %1310 = dma.done %s1306, 128
        $region76: #{tpu_custom_call.1} parent=71 // pred_fallthru
          _
      $region72: #{tpu_custom_call.1} parent=5 // pred_fallthru
        _
    $region6: #{tpu_custom_call.1} parent=1 // loop_footer
      %s24 = sadd.s32 1, %s20
    $region7: #{tpu_custom_call.1} parent=1 // loop_footer_branch
      %19 = sbr.rel target = $region3
    $region8: #{tpu_custom_call.1} parent=1 // loop_exit
      _
    %1311 = vsyncpa [#allocation6], 1
    %s1312 = scalar_lea.sflag [#allocation6], 1
    %1313 = vsyncpa %s1312, 1
    %1314 = vsyncpa [#allocation9], 1
    %1315 = vsyncpa [#allocation7], 1
    %s1316 = scalar_lea.sflag [#allocation7], 1
    %1317 = vsyncpa %s1316, 1

</llo_original>
